<compile_context>
chip_gen: v7x
topology: tpu7x:2x2x1
jax: 0.10.0
libtpu: 0.0.40
codegen_flags: <defaults>
</compile_context>

<pallas_src>
import jax
import jax.numpy as jnp
import numpy as np
from jax import lax
from jax.experimental import pallas as pl
from jax.experimental.pallas import tpu as pltpu

GEM_P = 3.0
GEM_EPS = 1e-6
L2_EPS = 1e-12
LANE = 128
_MIB = 1024 * 1024


def _round_up(x, m):
    return ((x + m - 1) // m) * m


def _tpu_generation():
    try:
        kind = jax.devices()[0].device_kind.lower()
    except Exception:
        return "unknown"
    if "v5 lite" in kind or "v5e" in kind or "v5lite" in kind:
        return "v5e"
    if "v6" in kind:
        return "v6e"
    if "v7" in kind or "7x" in kind:
        return "v7x"
    return "other"


# Generation-aware knobs:
#   tile_cap: largest spatial tile considered (v5e: 1 vst slot / no f32 FMA -> keep <=512;
#             v7x: only 64 MiB physical VMEM per TC -> keep <=1024).
#   budget  : per-step VMEM working-set budget used to shrink the tile.
#   ceiling : value for vmem_limit_bytes (kept under physical VMEM).
#   num_tc  : TensorCores per chip; the 'parallel' batch axis needs >= num_tc iterations.
_GEN_PARAMS = {
    "v5e":     dict(tile_cap=512,  budget=24 * _MIB, ceiling=96 * _MIB, num_tc=1),
    "v6e":     dict(tile_cap=2048, budget=40 * _MIB, ceiling=96 * _MIB, num_tc=1),
    "v7x":     dict(tile_cap=1024, budget=20 * _MIB, ceiling=48 * _MIB, num_tc=2),
    "other":   dict(tile_cap=1024, budget=20 * _MIB, ceiling=48 * _MIB, num_tc=1),
    "unknown": dict(tile_cap=1024, budget=20 * _MIB, ceiling=48 * _MIB, num_tc=1),
}


def _pick_bn(n, num_tc):
    """Largest divisor of n (<=8) that still leaves >= num_tc batch-grid iterations."""
    divs = [d for d in (8, 4, 2, 1) if d <= n and n % d == 0]
    for d in divs:
        if n // d >= num_tc:
            return d
    return divs[-1] if divs else 1


def _vmem_estimate(bn, cin, cfeat, tile, fout_pad):
    """Explicit per-step VMEM accounting: double-buffered blocks + live f32 temporaries."""
    f32 = 4
    inp = 2 * bn * 8 * tile * f32             # input block (Cin padded 3->8 sublanes), 2 bufs
    wconv = 2 * cin * cfeat * tile * f32      # pre-broadcast conv weights (constant block)
    temps = 3 * bn * cfeat * tile * f32       # feat / square / cube live temporaries
    acc = bn * cfeat * LANE * f32             # lane-wise GeM accumulator scratch
    wfc = 2 * cfeat * fout_pad * f32
    outb = 2 * bn * fout_pad * f32
    return inp + wconv + temps + acc + wfc + outb


def geolocalization_forward(images_nchw, w_conv, w_fc, b_fc, *, max_tile=None):
    """images_nchw: (N, Cin, H, W) f32 -> (N, fc_output_dim) f32 (L2-normalized)."""
    N, Cin, H, W = images_nchw.shape
    HW = H * W
    Cfeat, Fout = w_fc.shape
    assert w_conv.shape == (Cin, Cfeat)

    gen = _tpu_generation()
    params = _GEN_PARAMS.get(gen, _GEN_PARAMS["other"])

    # --- batch block: largest divisor of N (<=8) that keeps >= num_tc batch-grid steps ---
    BN = _pick_bn(N, params["num_tc"])

    # --- descriptor dim padded to a lane multiple (zero cols/bias -> norm unchanged) ---
    Fout_pad = _round_up(Fout, LANE)

    # --- spatial tile: biggest tile whose per-step working set fits the gen budget ---
    hw_lane = max(_round_up(HW, LANE), LANE)
    tile = params["tile_cap"]
    while tile > LANE and _vmem_estimate(BN, Cin, Cfeat, tile, Fout_pad) > params["budget"]:
        tile //= 2
    tile = min(tile, hw_lane)                      # never wider than the spatial extent
    if max_tile is not None:                       # explicit override (testing only)
        tile = min(tile, max(LANE, (max_tile // LANE) * LANE))
    tile = max(tile, LANE)
    num_k = -(-HW // tile)                         # ceil
    HW_pad = num_k * tile
    masked = HW_pad != HW                          # mask padded lanes -> exact GeM sum

    vmem_limit = int(min(params["ceiling"],
                         max(32 * _MIB,
                             int(1.3 * _vmem_estimate(BN, Cin, Cfeat, tile, Fout_pad))
                             + 4 * _MIB)))

    # NCHW -> (N, Cin, HW): spatial on lanes (pure reshape; Cin stays the full second-to-
    # last block dim so any BN is legal under the (8,128)/full-dim tiling rule).
    x = images_nchw.reshape(N, Cin, HW)
    if HW_pad != HW:
        x = jnp.pad(x, ((0, 0), (0, 0), (0, HW_pad - HW)))

    # Pre-broadcast conv weights across the lane axis host-side: DMA'd once (constant
    # index_map), removes the per-step weight lane-broadcast inside the kernel.
    w_conv_b = jnp.broadcast_to(w_conv[:, :, None], (Cin, Cfeat, tile))

    if Fout_pad != Fout:
        w_fc_p = jnp.pad(w_fc, ((0, 0), (0, Fout_pad - Fout)))
        b_fc_p = jnp.pad(b_fc, (0, Fout_pad - Fout)).reshape(1, Fout_pad)
    else:
        w_fc_p = w_fc
        b_fc_p = b_fc.reshape(1, Fout_pad)

    inv_hw = 1.0 / HW  # GeM mean uses the true spatial size

    def kernel(x_ref, wconv_ref, wfc_ref, bfc_ref, out_ref, acc_ref):
        k = pl.program_id(1)

        @pl.when(k == 0)
        def _init():
            acc_ref[...] = jnp.zeros_like(acc_ref)

        x_t = x_ref[...]          # (BN, Cin, tile)
        w_t = wconv_ref[...]      # (Cin, Cfeat, tile)  lane-dense, pre-broadcast

        # --- backbone stand-in: 1x1 conv as Cin broadcast FMAs on the VPU, then ReLU ---
        feat = w_t[0][None, :, :] * x_t[:, 0, :][:, None, :]          # (BN, Cfeat, tile)
        for c in range(1, Cin):
            feat = feat + w_t[c][None, :, :] * x_t[:, c, :][:, None, :]
        feat = jnp.maximum(feat, 0.0)

        # --- channel-wise L2Norm (F.normalize over dim=1): x * rsqrt(max(sum x^2, eps^2)) ---
        sq = jnp.sum(feat * feat, axis=1, keepdims=True)              # (BN, 1, tile)
        feat = feat * lax.rsqrt(jnp.maximum(sq, L2_EPS * L2_EPS))

        # --- GeM partial term: clamp(x, eps)^3 via two VPU multiplies (no EUP pow) ---
        c3 = jnp.maximum(feat, GEM_EPS)
        c3 = c3 * c3 * c3

        if masked:
            # zero the padded spatial lanes so the GeM mean is exactly over HW pixels
            idx = lax.broadcasted_iota(jnp.int32, (1, 1, tile), 2)
            c3 = jnp.where(k * tile + idx < HW, c3, 0.0)

        # --- lane-wise accumulation: VPU adds only; single cross-lane reduce at finalize ---
        partial = c3[:, :, 0:LANE]
        for j in range(1, tile // LANE):
            partial = partial + c3[:, :, j * LANE:(j + 1) * LANE]
        acc_ref[...] += partial                                       # (BN, Cfeat, LANE)

        # --- finalize on the last spatial tile: ^(1/p), FC + bias, final L2Norm ---
        @pl.when(k == pl.num_programs(1) - 1)
        def _finalize():
            pooled = jnp.sum(acc_ref[...], axis=2) * inv_hw           # (BN, Cfeat) GeM mean
            # pooled >= GEM_EPS**3 > 0 thanks to the clamp, so log is safe
            pooled = jnp.exp(jnp.log(pooled) * (1.0 / GEM_P))
            y = jnp.dot(pooled, wfc_ref[...],
                        preferred_element_type=jnp.float32) + bfc_ref[...]
            inv = lax.rsqrt(jnp.maximum(jnp.sum(y * y, axis=-1, keepdims=True),
                                        L2_EPS * L2_EPS))
            out_ref[...] = (y * inv)[:, None, :]                      # (BN, 1, Fout_pad)

    out3 = pl.pallas_call(
        kernel,
        # 3-D output so the last two block dims are (1, Fout_pad): always legal for any BN.
        out_shape=jax.ShapeDtypeStruct((N, 1, Fout_pad), jnp.float32),
        grid=(N // BN, num_k),
        in_specs=[
            pl.BlockSpec((BN, Cin, tile), lambda b, k: (b, 0, k)),
            pl.BlockSpec((Cin, Cfeat, tile), lambda b, k: (0, 0, 0)),
            pl.BlockSpec((Cfeat, Fout_pad), lambda b, k: (0, 0)),
            pl.BlockSpec((1, Fout_pad), lambda b, k: (0, 0)),
        ],
        out_specs=pl.BlockSpec((BN, 1, Fout_pad), lambda b, k: (b, 0, 0)),
        scratch_shapes=[pltpu.VMEM((BN, Cfeat, LANE), jnp.float32)],
        compiler_params=pltpu.CompilerParams(
            dimension_semantics=("parallel", "arbitrary"),
            vmem_limit_bytes=vmem_limit),
    )(x, w_conv_b, w_fc_p, b_fc_p)

    return out3.reshape(N, Fout_pad)[:, :Fout]


def _reference(images_nchw, w_conv, w_fc, b_fc):
    """Pure-JAX reference mirroring the PyTorch aggregation semantics."""
    N, Cin, H, W = images_nchw.shape
    x = images_nchw.reshape(N, Cin, H * W)
    f = jnp.maximum(jnp.einsum("cf,ncp->nfp", w_conv, x), 0.0)       # (N, Cfeat, HW)
    f = f / jnp.maximum(jnp.sqrt(jnp.sum(f * f, axis=1, keepdims=True)), L2_EPS)
    g = jnp.mean(jnp.maximum(f, GEM_EPS) ** GEM_P, axis=2) ** (1.0 / GEM_P)
    y = g @ w_fc + b_fc[None, :]
    y = y / jnp.maximum(jnp.sqrt(jnp.sum(y * y, axis=-1, keepdims=True)), L2_EPS)
    return y


if __name__ == "__main__":
    # Small synthetic shapes consistent with the module's forward pass.
    N, Cin, H, W = 2, 3, 16, 16          # input images (NCHW)
    FEATURES_DIM = 128                   # stand-in for CHANNELS_NUM_IN_LAST_CONV[backbone]
    FC_OUTPUT_DIM = 64                   # descriptor dimension

    key = jax.random.PRNGKey(0)
    k_img, k_conv, k_fc, k_b, k_img2 = jax.random.split(key, 5)

    images = jax.random.normal(k_img, (N, Cin, H, W), dtype=jnp.float32)
    w_conv = jax.random.normal(k_conv, (Cin, FEATURES_DIM), dtype=jnp.float32) * 0.1
    # nn.Linear(features_dim, fc_output_dim): torch weight is (out, in); store transposed.
    w_fc = jax.random.normal(k_fc, (FEATURES_DIM, FC_OUTPUT_DIM), dtype=jnp.float32) * 0.05
    b_fc = jax.random.normal(k_b, (FC_OUTPUT_DIM,), dtype=jnp.float32) * 0.01

    ref = jax.block_until_ready(_reference(images, w_conv, w_fc, b_fc))

    # 1) default tiling (single spatial tile for this small HW)
    out = jax.block_until_ready(geolocalization_forward(images, w_conv, w_fc, b_fc))
    assert out.shape == (N, FC_OUTPUT_DIM), out.shape
    np.testing.assert_allclose(np.asarray(out), np.asarray(ref), rtol=1e-3, atol=1e-3)
    np.testing.assert_allclose(np.linalg.norm(np.asarray(out), axis=1),
                               np.ones(N), rtol=1e-4, atol=1e-4)

    # 2) forced 128-wide tiles -> 2 spatial grid steps: exercises the GeM accumulator.
    out2 = jax.block_until_ready(
        geolocalization_forward(images, w_conv, w_fc, b_fc, max_tile=128))
    np.testing.assert_allclose(np.asarray(out2), np.asarray(ref), rtol=1e-3, atol=1e-3)

    # 3) non-lane-multiple spatial size (10x10 -> HW=100): exercises the padded-lane mask.
    images_odd = jax.random.normal(k_img2, (N, Cin, 10, 10), dtype=jnp.float32)
    ref_odd = jax.block_until_ready(_reference(images_odd, w_conv, w_fc, b_fc))
    out_odd = jax.block_until_ready(
        geolocalization_forward(images_odd, w_conv, w_fc, b_fc))
    np.testing.assert_allclose(np.asarray(out_odd), np.asarray(ref_odd),
                               rtol=1e-3, atol=1e-3)

    print("KERNEL_OK")
</pallas_src>

<mosaic_0001>
module attributes {stable_mosaic.version = 11 : i64} {
  func.func @kernel(%arg0: i32, %arg1: i32, %arg2: memref<2x3x256xf32, #tpu.memory_space<vmem>>, %arg3: memref<3x128x256xf32, #tpu.memory_space<vmem>>, %arg4: memref<128x128xf32, #tpu.memory_space<vmem>>, %arg5: memref<1x128xf32, #tpu.memory_space<vmem>>, %arg6: memref<2x1x128xf32, #tpu.memory_space<vmem>>, %arg7: memref<2x128x128xf32, #tpu.memory_space<vmem>>) attributes {dimension_semantics = [#tpu.dimension_semantics<parallel>, #tpu.dimension_semantics<arbitrary>], iteration_bounds = array<i64: 1, 1>, scalar_prefetch = 0 : i64, scratch_operands = 1 : i64, tpu.core_type = #tpu.core_type<tc>, window_params = [{transform_indices = @transform_0, window_bounds = array<i64: 2, 3, 256>}, {pipeline_mode = #tpu.pipeline_mode<synchronous>, transform_indices = @transform_1, window_bounds = array<i64: 3, 128, 256>}, {pipeline_mode = #tpu.pipeline_mode<synchronous>, transform_indices = @transform_2, window_bounds = array<i64: 128, 128>}, {pipeline_mode = #tpu.pipeline_mode<synchronous>, transform_indices = @transform_3, window_bounds = array<i64: 1, 128>}, {transform_indices = @transform_4, window_bounds = array<i64: 2, 1, 128>}]} {
    %c0_i32 = arith.constant 0 : i32
    %0 = arith.cmpi eq, %arg1, %c0_i32 : i32
    %1 = arith.extui %0 : i1 to i32
    %c0_i32_0 = arith.constant 0 : i32
    %2 = arith.cmpi ne, %1, %c0_i32_0 : i32
    scf.if %2 {
      %cst_17 = arith.constant 0.000000e+00 : f32
      %57 = vector.broadcast %cst_17 : f32 to vector<2x128x128xf32>
      %c0_18 = arith.constant 0 : index
      %c0_19 = arith.constant 0 : index
      %c0_20 = arith.constant 0 : index
      %58 = vector.load %arg7[%c0_18, %c0_19, %c0_20] : memref<2x128x128xf32, #tpu.memory_space<vmem>>, vector<2x128x128xf32>
      tpu.vector_store %arg7[%c0_18, %c0_19, %c0_20], %57 {strides = array<i32>} : memref<2x128x128xf32, #tpu.memory_space<vmem>>, vector<2x128x128xf32>,
    } else {
    }
    %c0 = arith.constant 0 : index
    %c0_1 = arith.constant 0 : index
    %c0_2 = arith.constant 0 : index
    %3 = vector.load %arg2[%c0, %c0_1, %c0_2] : memref<2x3x256xf32, #tpu.memory_space<vmem>>, vector<2x3x256xf32>
    %c0_3 = arith.constant 0 : index
    %c0_4 = arith.constant 0 : index
    %c0_5 = arith.constant 0 : index
    %4 = vector.load %arg3[%c0_3, %c0_4, %c0_5] : memref<3x128x256xf32, #tpu.memory_space<vmem>>, vector<3x128x256xf32>
    %5 = vector.extract_strided_slice %4 {offsets = [0, 0, 0], sizes = [1, 128, 256], strides = [1, 1, 1]} : vector<3x128x256xf32> to vector<1x128x256xf32>
    %6 = vector.shape_cast %5 : vector<1x128x256xf32> to vector<128x256xf32>
    %7 = vector.shape_cast %6 : vector<128x256xf32> to vector<1x128x256xf32>
    %8 = vector.extract_strided_slice %3 {offsets = [0, 0, 0], sizes = [2, 1, 256], strides = [1, 1, 1]} : vector<2x3x256xf32> to vector<2x1x256xf32>
    %9 = vector.shape_cast %8 : vector<2x1x256xf32> to vector<2x256xf32>
    %10 = vector.shape_cast %9 : vector<2x256xf32> to vector<2x1x256xf32>
    %11 = vector.broadcast %7 : vector<1x128x256xf32> to vector<2x128x256xf32>
    %12 = vector.broadcast %10 : vector<2x1x256xf32> to vector<2x128x256xf32>
    %13 = arith.mulf %11, %12 : vector<2x128x256xf32>
    %14 = vector.extract_strided_slice %4 {offsets = [1, 0, 0], sizes = [1, 128, 256], strides = [1, 1, 1]} : vector<3x128x256xf32> to vector<1x128x256xf32>
    %15 = vector.shape_cast %14 : vector<1x128x256xf32> to vector<128x256xf32>
    %16 = vector.shape_cast %15 : vector<128x256xf32> to vector<1x128x256xf32>
    %17 = vector.extract_strided_slice %3 {offsets = [0, 1, 0], sizes = [2, 1, 256], strides = [1, 1, 1]} : vector<2x3x256xf32> to vector<2x1x256xf32>
    %18 = vector.shape_cast %17 : vector<2x1x256xf32> to vector<2x256xf32>
    %19 = vector.shape_cast %18 : vector<2x256xf32> to vector<2x1x256xf32>
    %20 = vector.broadcast %16 : vector<1x128x256xf32> to vector<2x128x256xf32>
    %21 = vector.broadcast %19 : vector<2x1x256xf32> to vector<2x128x256xf32>
    %22 = arith.mulf %20, %21 : vector<2x128x256xf32>
    %23 = arith.addf %13, %22 : vector<2x128x256xf32>
    %24 = vector.extract_strided_slice %4 {offsets = [2, 0, 0], sizes = [1, 128, 256], strides = [1, 1, 1]} : vector<3x128x256xf32> to vector<1x128x256xf32>
    %25 = vector.shape_cast %24 : vector<1x128x256xf32> to vector<128x256xf32>
    %26 = vector.shape_cast %25 : vector<128x256xf32> to vector<1x128x256xf32>
    %27 = vector.extract_strided_slice %3 {offsets = [0, 2, 0], sizes = [2, 1, 256], strides = [1, 1, 1]} : vector<2x3x256xf32> to vector<2x1x256xf32>
    %28 = vector.shape_cast %27 : vector<2x1x256xf32> to vector<2x256xf32>
    %29 = vector.shape_cast %28 : vector<2x256xf32> to vector<2x1x256xf32>
    %30 = vector.broadcast %26 : vector<1x128x256xf32> to vector<2x128x256xf32>
    %31 = vector.broadcast %29 : vector<2x1x256xf32> to vector<2x128x256xf32>
    %32 = arith.mulf %30, %31 : vector<2x128x256xf32>
    %33 = arith.addf %23, %32 : vector<2x128x256xf32>
    %cst = arith.constant 0.000000e+00 : f32
    %34 = vector.broadcast %cst : f32 to vector<2x128x256xf32>
    %35 = arith.maximumf %33, %34 : vector<2x128x256xf32>
    %36 = arith.mulf %35, %35 : vector<2x128x256xf32>
    %cst_6 = arith.constant dense<0.000000e+00> : vector<2x256xf32>
    %37 = vector.multi_reduction <add>, %36, %cst_6 [1] : vector<2x128x256xf32> to vector<2x256xf32>
    %38 = vector.shape_cast %37 : vector<2x256xf32> to vector<2x1x256xf32>
    %cst_7 = arith.constant 1.000000e-24 : f32
    %39 = vector.broadcast %cst_7 : f32 to vector<2x1x256xf32>
    %40 = arith.maximumf %38, %39 : vector<2x1x256xf32>
    %41 = math.rsqrt %40 : vector<2x1x256xf32>
    %42 = vector.broadcast %41 : vector<2x1x256xf32> to vector<2x128x256xf32>
    %43 = arith.mulf %35, %42 : vector<2x128x256xf32>
    %cst_8 = arith.constant 9.99999997E-7 : f32
    %44 = vector.broadcast %cst_8 : f32 to vector<2x128x256xf32>
    %45 = arith.maximumf %43, %44 : vector<2x128x256xf32>
    %46 = arith.mulf %45, %45 : vector<2x128x256xf32>
    %47 = arith.mulf %46, %45 : vector<2x128x256xf32>
    %48 = vector.extract_strided_slice %47 {offsets = [0, 0, 0], sizes = [2, 128, 128], strides = [1, 1, 1]} : vector<2x128x256xf32> to vector<2x128x128xf32>
    %49 = vector.extract_strided_slice %47 {offsets = [0, 0, 128], sizes = [2, 128, 128], strides = [1, 1, 1]} : vector<2x128x256xf32> to vector<2x128x128xf32>
    %50 = arith.addf %48, %49 : vector<2x128x128xf32>
    %c0_9 = arith.constant 0 : index
    %c0_10 = arith.constant 0 : index
    %c0_11 = arith.constant 0 : index
    %51 = vector.load %arg7[%c0_9, %c0_10, %c0_11] : memref<2x128x128xf32, #tpu.memory_space<vmem>>, vector<2x128x128xf32>
    %52 = arith.addf %51, %50 : vector<2x128x128xf32>
    %c0_12 = arith.constant 0 : index
    %c0_13 = arith.constant 0 : index
    %c0_14 = arith.constant 0 : index
    %53 = vector.load %arg7[%c0_12, %c0_13, %c0_14] : memref<2x128x128xf32, #tpu.memory_space<vmem>>, vector<2x128x128xf32>
    tpu.vector_store %arg7[%c0_12, %c0_13, %c0_14], %52 {strides = array<i32>} : memref<2x128x128xf32, #tpu.memory_space<vmem>>, vector<2x128x128xf32>,
    %c0_i32_15 = arith.constant 0 : i32
    %54 = arith.cmpi eq, %arg1, %c0_i32_15 : i32
    %55 = arith.extui %54 : i1 to i32
    %c0_i32_16 = arith.constant 0 : i32
    %56 = arith.cmpi ne, %55, %c0_i32_16 : i32
    scf.if %56 {
      %c0_17 = arith.constant 0 : index
      %c0_18 = arith.constant 0 : index
      %c0_19 = arith.constant 0 : index
      %57 = vector.load %arg7[%c0_17, %c0_18, %c0_19] : memref<2x128x128xf32, #tpu.memory_space<vmem>>, vector<2x128x128xf32>
      %cst_20 = arith.constant dense<0.000000e+00> : vector<2x128xf32>
      %58 = vector.multi_reduction <add>, %57, %cst_20 [2] : vector<2x128x128xf32> to vector<2x128xf32>
      %cst_21 = arith.constant 3.906250e-03 : f32
      %59 = vector.broadcast %cst_21 : f32 to vector<2x128xf32>
      %60 = arith.mulf %58, %59 : vector<2x128xf32>
      %61 = math.log %60 : vector<2x128xf32>
      %cst_22 = arith.constant 0.333333343 : f32
      %62 = vector.broadcast %cst_22 : f32 to vector<2x128xf32>
      %63 = arith.mulf %61, %62 : vector<2x128xf32>
      %64 = math.exp %63 : vector<2x128xf32>
      %c0_23 = arith.constant 0 : index
      %c0_24 = arith.constant 0 : index
      %65 = vector.load %arg4[%c0_23, %c0_24] : memref<128x128xf32, #tpu.memory_space<vmem>>, vector<128x128xf32>
      %cst_25 = arith.constant dense<0.000000e+00> : vector<2x128xf32>
      %66 = tpu.matmul %64, %65, %cst_25 {dimension_numbers = #tpu.dot_dimension_numbers<[1], [0], [0], [1], [0, 0, 1, 1], [], []>} : vector<2x128xf32>, vector<128x128xf32>, vector<2x128xf32> -> vector<2x128xf32>
      %c0_26 = arith.constant 0 : index
      %c0_27 = arith.constant 0 : index
      %67 = vector.load %arg5[%c0_26, %c0_27] : memref<1x128xf32, #tpu.memory_space<vmem>>, vector<1x128xf32>
      %68 = vector.broadcast %67 : vector<1x128xf32> to vector<2x128xf32>
      %69 = arith.addf %66, %68 : vector<2x128xf32>
      %70 = arith.mulf %69, %69 : vector<2x128xf32>
      %cst_28 = arith.constant dense<0.000000e+00> : vector<2xf32>
      %71 = vector.multi_reduction <add>, %70, %cst_28 [1] : vector<2x128xf32> to vector<2xf32>
      %72 = vector.shape_cast %71 : vector<2xf32> to vector<2x1xf32>
      %cst_29 = arith.constant 1.000000e-24 : f32
      %73 = vector.broadcast %cst_29 : f32 to vector<2x1xf32>
      %74 = arith.maximumf %72, %73 : vector<2x1xf32>
      %75 = math.rsqrt %74 : vector<2x1xf32>
      %76 = vector.broadcast %75 : vector<2x1xf32> to vector<2x128xf32>
      %77 = arith.mulf %69, %76 : vector<2x128xf32>
      %78 = vector.shape_cast %77 : vector<2x128xf32> to vector<2x1x128xf32>
      %c0_30 = arith.constant 0 : index
      %c0_31 = arith.constant 0 : index
      %c0_32 = arith.constant 0 : index
      %79 = vector.load %arg6[%c0_30, %c0_31, %c0_32] : memref<2x1x128xf32, #tpu.memory_space<vmem>>, vector<2x1x128xf32>
      tpu.vector_store %arg6[%c0_30, %c0_31, %c0_32], %78 {strides = array<i32>} : memref<2x1x128xf32, #tpu.memory_space<vmem>>, vector<2x1x128xf32>,
    } else {
    }
    return
  }
  func.func @transform_0(%arg0: i32, %arg1: i32) -> (i32, i32, i32) {
    %c0_i32 = arith.constant 0 : i32
    %c0_i32_0 = arith.constant 0 : i32
    return %arg0, %c0_i32, %arg1 : i32, i32, i32
  }
  func.func @transform_1(%arg0: i32, %arg1: i32) -> (i32, i32, i32) {
    %c0_i32 = arith.constant 0 : i32
    %c0_i32_0 = arith.constant 0 : i32
    %c0_i32_1 = arith.constant 0 : i32
    %c0_i32_2 = arith.constant 0 : i32
    return %c0_i32, %c0_i32_0, %c0_i32_1 : i32, i32, i32
  }
  func.func @transform_2(%arg0: i32, %arg1: i32) -> (i32, i32) {
    %c0_i32 = arith.constant 0 : i32
    %c0_i32_0 = arith.constant 0 : i32
    %c0_i32_1 = arith.constant 0 : i32
    return %c0_i32, %c0_i32_0 : i32, i32
  }
  func.func @transform_3(%arg0: i32, %arg1: i32) -> (i32, i32) {
    %c0_i32 = arith.constant 0 : i32
    %c0_i32_0 = arith.constant 0 : i32
    %c0_i32_1 = arith.constant 0 : i32
    return %c0_i32, %c0_i32_0 : i32, i32
  }
  func.func @transform_4(%arg0: i32, %arg1: i32) -> (i32, i32, i32) {
    %c0_i32 = arith.constant 0 : i32
    %c0_i32_0 = arith.constant 0 : i32
    %c0_i32_1 = arith.constant 0 : i32
    return %arg0, %c0_i32, %c0_i32_0 : i32, i32, i32
  }
}

</mosaic_0001>

<llo_original>
// kernel: tpu_custom_call.1
$region0: #{tpu_custom_call.1}
  #allocation0 [shape = 'u32[]', space=smem, size = 0x4, offset = 0x4, fixed_abs, tag = 'smem constant byte address 0x4 - core index']
  #allocation1 [shape = 'u32[144,128]{1,0:T(1,128)}', space=vmem, size = 0x12000, scoped, tag = 'internal scratch']
  #allocation2 [shape = 'f32[2,128,128]{2,1,0:T(8,128)}', space=vmem, size = 0x20000, scoped, tag = 'scratch operand']
  %s0 = inlined_call_operand.vmem [shape: f32[2,3,256], index: 0, kind: input, shape index: {}]
  %s1 = inlined_call_operand.hbm [shape: f32[3,128,256], index: 1, kind: input, shape index: {}]
  %s2 = inlined_call_operand.hbm [shape: f32[128,128], index: 2, kind: input, shape index: {}]
  %s3 = inlined_call_operand.vmem [shape: f32[1,128], index: 3, kind: input, shape index: {}]
  %s4 = inlined_call_operand.hbm [shape: f32[2,1,128], index: 4, kind: output, shape index: {}]
  %s5 = sld [smem:[#allocation0]]
  $region42: #{tpu_custom_call.1} parent=0
    _
  %s7 = ssub.s32 1, %s5
  %s8 = scalar_select 0, %s7, %s5
  $region1: #{tpu_custom_call.1} parent=0
    #allocation3 [shape = 'u8[393216]{0}', space=vmem, size = 0x60000, scoped, tag = 'input window, operand 1, single buffered']
    #allocation4 [shape = 's32[1]{0}', space=sflag, size = 0x4, scoped, tag = 'scoped memory for tpu_custom_call.1']
    #allocation5 [shape = 's32[1]{0}', space=sflag, size = 0x4, scoped, tag = 'scoped memory for tpu_custom_call.1']
    #allocation6 [shape = 'u8[65536]{0}', space=vmem, size = 0x10000, scoped, tag = 'input window, operand 2, single buffered']
    #allocation7 [shape = 's32[1]{0}', space=sflag, size = 0x4, scoped, tag = 'scoped memory for tpu_custom_call.1']
    #allocation8 [shape = 'u8[1024]{0}', space=vmem, size = 0x400, scoped, tag = 'output window, operand 0, single buffered']
    %9 = vsyncpa [#allocation4], 0
    %10 = vsyncpa [#allocation7], 0
    %11 = vsyncpa [#allocation5], 0
    // Predicated region
    $region2: #{tpu_custom_call.1} parent=1 // pred_check
      _
    $region3: #{tpu_custom_call.1} parent=1 // pred_check_branch
      %13 = sbr.rel (0) target = $region5
    $region4: #{tpu_custom_call.1} parent=1 // pred_region
      _
    $region5: #{tpu_custom_call.1} parent=1 // pred_fallthru
      _
    // Predicated region
    $region6: #{tpu_custom_call.1} parent=1 // pred_check
      _
    $region7: #{tpu_custom_call.1} parent=1 // pred_check_branch
      %15 = sbr.rel (0) target = $region9
    $region8: #{tpu_custom_call.1} parent=1 // pred_region
      %s17 = ssub.s32 12288, 12288
      %18 = vsyncadd [#allocation4], %s17
      %s19 = sshll.u32 [#allocation3], 4
      %s20 = int_to_ptr.vmem [resolvable:$true] %s19
      %25 = dma.hbm_to_vmem [thread:$0]  %s1, 12288, %s20, [#allocation4], 256, 256, 16
    $region9: #{tpu_custom_call.1} parent=1 // pred_fallthru
      _
    // Predicated region
    $region10: #{tpu_custom_call.1} parent=1 // pred_check
      _
    $region11: #{tpu_custom_call.1} parent=1 // pred_check_branch
      %27 = sbr.rel (0) target = $region13
    $region12: #{tpu_custom_call.1} parent=1 // pred_region
      %s29 = ssub.s32 2048, 2048
      %30 = vsyncadd [#allocation7], %s29
      %s31 = sshll.u32 [#allocation6], 4
      %s32 = int_to_ptr.vmem [resolvable:$true] %s31
      %37 = dma.hbm_to_vmem [thread:$0]  %s2, 2048, %s32, [#allocation7], 128, 128, 8
    $region13: #{tpu_custom_call.1} parent=1 // pred_fallthru
      _
    // Predicated region
    $region14: #{tpu_custom_call.1} parent=1 // pred_check
      _
    $region15: #{tpu_custom_call.1} parent=1 // pred_check_branch
      %39 = sbr.rel (0) target = $region17
    $region16: #{tpu_custom_call.1} parent=1 // pred_region
      _
    $region17: #{tpu_custom_call.1} parent=1 // pred_fallthru
      _
    // Predicated region
    $region18: #{tpu_custom_call.1} parent=1 // pred_check
      _
    $region19: #{tpu_custom_call.1} parent=1 // pred_check_branch
      %41 = sbr.rel (0) target = $region21
    $region20: #{tpu_custom_call.1} parent=1 // pred_region
      %42 = dma.done [#allocation4], 12288
    $region21: #{tpu_custom_call.1} parent=1 // pred_fallthru
      _
    // Predicated region
    $region22: #{tpu_custom_call.1} parent=1 // pred_check
      _
    $region23: #{tpu_custom_call.1} parent=1 // pred_check_branch
      %44 = sbr.rel (0) target = $region25
    $region24: #{tpu_custom_call.1} parent=1 // pred_region
      %45 = dma.done [#allocation7], 2048
    $region25: #{tpu_custom_call.1} parent=1 // pred_fallthru
      _
    %p46 = scmp.eq.s32.totalorder 0, 0
    // Predicated region
    $region26: #{tpu_custom_call.1} parent=1 // pred_check
      %p47 = pneg %p46
    $region27: #{tpu_custom_call.1} parent=1 // pred_check_branch
      %49 = sbr.rel (%p47) target = $region29
    $region28: #{tpu_custom_call.1} parent=1 // pred_region
      %50 = vst [vmem:[#allocation2] sm:$0xff] 0.0
      %51 = vst [vmem:[#allocation2 + $0x8] sm:$0xff] 0.0
      %52 = vst [vmem:[#allocation2 + $0x10] sm:$0xff] 0.0
      %53 = vst [vmem:[#allocation2 + $0x18] sm:$0xff] 0.0
      %54 = vst [vmem:[#allocation2 + $0x20] sm:$0xff] 0.0
      %55 = vst [vmem:[#allocation2 + $0x28] sm:$0xff] 0.0
      %56 = vst [vmem:[#allocation2 + $0x30] sm:$0xff] 0.0
      %57 = vst [vmem:[#allocation2 + $0x38] sm:$0xff] 0.0
      %58 = vst [vmem:[#allocation2 + $0x40] sm:$0xff] 0.0
      %59 = vst [vmem:[#allocation2 + $0x48] sm:$0xff] 0.0
      %60 = vst [vmem:[#allocation2 + $0x50] sm:$0xff] 0.0
      %61 = vst [vmem:[#allocation2 + $0x58] sm:$0xff] 0.0
      %62 = vst [vmem:[#allocation2 + $0x60] sm:$0xff] 0.0
      %63 = vst [vmem:[#allocation2 + $0x68] sm:$0xff] 0.0
      %64 = vst [vmem:[#allocation2 + $0x70] sm:$0xff] 0.0
      %65 = vst [vmem:[#allocation2 + $0x78] sm:$0xff] 0.0
      %66 = vst [vmem:[#allocation2 + $0x80] sm:$0xff] 0.0
      %67 = vst [vmem:[#allocation2 + $0x88] sm:$0xff] 0.0
      %68 = vst [vmem:[#allocation2 + $0x90] sm:$0xff] 0.0
      %69 = vst [vmem:[#allocation2 + $0x98] sm:$0xff] 0.0
      %70 = vst [vmem:[#allocation2 + $0xa0] sm:$0xff] 0.0
      %71 = vst [vmem:[#allocation2 + $0xa8] sm:$0xff] 0.0
      %72 = vst [vmem:[#allocation2 + $0xb0] sm:$0xff] 0.0
      %73 = vst [vmem:[#allocation2 + $0xb8] sm:$0xff] 0.0
      %74 = vst [vmem:[#allocation2 + $0xc0] sm:$0xff] 0.0
      %75 = vst [vmem:[#allocation2 + $0xc8] sm:$0xff] 0.0
      %76 = vst [vmem:[#allocation2 + $0xd0] sm:$0xff] 0.0
      %77 = vst [vmem:[#allocation2 + $0xd8] sm:$0xff] 0.0
      %78 = vst [vmem:[#allocation2 + $0xe0] sm:$0xff] 0.0
      %79 = vst [vmem:[#allocation2 + $0xe8] sm:$0xff] 0.0
      %80 = vst [vmem:[#allocation2 + $0xf0] sm:$0xff] 0.0
      %81 = vst [vmem:[#allocation2 + $0xf8] sm:$0xff] 0.0
    $region29: #{tpu_custom_call.1} parent=1 // pred_fallthru
      _
    %v82 = vld [vmem:[%s0] sm:$0x77]
    %v83 = vld [vmem:[%s0 + $0x8] sm:$0x77]
    %v84 = vld [vmem:[#allocation3] sm:$0xff]
    %v85 = vld [vmem:[#allocation3 + $0x8] sm:$0xff]
    %v86 = vld [vmem:[#allocation3 + $0x10] sm:$0xff]
    %v87 = vld [vmem:[#allocation3 + $0x18] sm:$0xff]
    %v88 = vld [vmem:[#allocation3 + $0x20] sm:$0xff]
    %v89 = vld [vmem:[#allocation3 + $0x28] sm:$0xff]
    %v90 = vld [vmem:[#allocation3 + $0x30] sm:$0xff]
    %v91 = vld [vmem:[#allocation3 + $0x38] sm:$0xff]
    %v92 = vld [vmem:[#allocation3 + $0x40] sm:$0xff]
    %v93 = vld [vmem:[#allocation3 + $0x48] sm:$0xff]
    %v94 = vld [vmem:[#allocation3 + $0x50] sm:$0xff]
    %v95 = vld [vmem:[#allocation3 + $0x58] sm:$0xff]
    %v96 = vld [vmem:[#allocation3 + $0x60] sm:$0xff]
    %v97 = vld [vmem:[#allocation3 + $0x68] sm:$0xff]
    %v98 = vld [vmem:[#allocation3 + $0x70] sm:$0xff]
    %v99 = vld [vmem:[#allocation3 + $0x78] sm:$0xff]
    %v100 = vld [vmem:[#allocation3 + $0x80] sm:$0xff]
    %v101 = vld [vmem:[#allocation3 + $0x88] sm:$0xff]
    %v102 = vld [vmem:[#allocation3 + $0x90] sm:$0xff]
    %v103 = vld [vmem:[#allocation3 + $0x98] sm:$0xff]
    %v104 = vld [vmem:[#allocation3 + $0xa0] sm:$0xff]
    %v105 = vld [vmem:[#allocation3 + $0xa8] sm:$0xff]
    %v106 = vld [vmem:[#allocation3 + $0xb0] sm:$0xff]
    %v107 = vld [vmem:[#allocation3 + $0xb8] sm:$0xff]
    %v108 = vld [vmem:[#allocation3 + $0xc0] sm:$0xff]
    %v109 = vld [vmem:[#allocation3 + $0xc8] sm:$0xff]
    %v110 = vld [vmem:[#allocation3 + $0xd0] sm:$0xff]
    %v111 = vld [vmem:[#allocation3 + $0xd8] sm:$0xff]
    %v112 = vld [vmem:[#allocation3 + $0xe0] sm:$0xff]
    %v113 = vld [vmem:[#allocation3 + $0xe8] sm:$0xff]
    %v114 = vld [vmem:[#allocation3 + $0xf0] sm:$0xff]
    %v115 = vld [vmem:[#allocation3 + $0xf8] sm:$0xff]
    %v116 = vld [vmem:[#allocation3 + $0x100] sm:$0xff]
    %v117 = vld [vmem:[#allocation3 + $0x108] sm:$0xff]
    %v118 = vld [vmem:[#allocation3 + $0x110] sm:$0xff]
    %v119 = vld [vmem:[#allocation3 + $0x118] sm:$0xff]
    %v120 = vld [vmem:[#allocation3 + $0x120] sm:$0xff]
    %v121 = vld [vmem:[#allocation3 + $0x128] sm:$0xff]
    %v122 = vld [vmem:[#allocation3 + $0x130] sm:$0xff]
    %v123 = vld [vmem:[#allocation3 + $0x138] sm:$0xff]
    %v124 = vld [vmem:[#allocation3 + $0x140] sm:$0xff]
    %v125 = vld [vmem:[#allocation3 + $0x148] sm:$0xff]
    %v126 = vld [vmem:[#allocation3 + $0x150] sm:$0xff]
    %v127 = vld [vmem:[#allocation3 + $0x158] sm:$0xff]
    %v128 = vld [vmem:[#allocation3 + $0x160] sm:$0xff]
    %v129 = vld [vmem:[#allocation3 + $0x168] sm:$0xff]
    %v130 = vld [vmem:[#allocation3 + $0x170] sm:$0xff]
    %v131 = vld [vmem:[#allocation3 + $0x178] sm:$0xff]
    %v132 = vld [vmem:[#allocation3 + $0x180] sm:$0xff]
    %v133 = vld [vmem:[#allocation3 + $0x188] sm:$0xff]
    %v134 = vld [vmem:[#allocation3 + $0x190] sm:$0xff]
    %v135 = vld [vmem:[#allocation3 + $0x198] sm:$0xff]
    %v136 = vld [vmem:[#allocation3 + $0x1a0] sm:$0xff]
    %v137 = vld [vmem:[#allocation3 + $0x1a8] sm:$0xff]
    %v138 = vld [vmem:[#allocation3 + $0x1b0] sm:$0xff]
    %v139 = vld [vmem:[#allocation3 + $0x1b8] sm:$0xff]
    %v140 = vld [vmem:[#allocation3 + $0x1c0] sm:$0xff]
    %v141 = vld [vmem:[#allocation3 + $0x1c8] sm:$0xff]
    %v142 = vld [vmem:[#allocation3 + $0x1d0] sm:$0xff]
    %v143 = vld [vmem:[#allocation3 + $0x1d8] sm:$0xff]
    %v144 = vld [vmem:[#allocation3 + $0x1e0] sm:$0xff]
    %v145 = vld [vmem:[#allocation3 + $0x1e8] sm:$0xff]
    %v146 = vld [vmem:[#allocation3 + $0x1f0] sm:$0xff]
    %v147 = vld [vmem:[#allocation3 + $0x1f8] sm:$0xff]
    %v148 = vld [vmem:[#allocation3 + $0x200] sm:$0xff]
    %v149 = vld [vmem:[#allocation3 + $0x208] sm:$0xff]
    %v150 = vld [vmem:[#allocation3 + $0x210] sm:$0xff]
    %v151 = vld [vmem:[#allocation3 + $0x218] sm:$0xff]
    %v152 = vld [vmem:[#allocation3 + $0x220] sm:$0xff]
    %v153 = vld [vmem:[#allocation3 + $0x228] sm:$0xff]
    %v154 = vld [vmem:[#allocation3 + $0x230] sm:$0xff]
    %v155 = vld [vmem:[#allocation3 + $0x238] sm:$0xff]
    %v156 = vld [vmem:[#allocation3 + $0x240] sm:$0xff]
    %v157 = vld [vmem:[#allocation3 + $0x248] sm:$0xff]
    %v158 = vld [vmem:[#allocation3 + $0x250] sm:$0xff]
    %v159 = vld [vmem:[#allocation3 + $0x258] sm:$0xff]
    %v160 = vld [vmem:[#allocation3 + $0x260] sm:$0xff]
    %v161 = vld [vmem:[#allocation3 + $0x268] sm:$0xff]
    %v162 = vld [vmem:[#allocation3 + $0x270] sm:$0xff]
    %v163 = vld [vmem:[#allocation3 + $0x278] sm:$0xff]
    %v164 = vld [vmem:[#allocation3 + $0x280] sm:$0xff]
    %v165 = vld [vmem:[#allocation3 + $0x288] sm:$0xff]
    %v166 = vld [vmem:[#allocation3 + $0x290] sm:$0xff]
    %v167 = vld [vmem:[#allocation3 + $0x298] sm:$0xff]
    %v168 = vld [vmem:[#allocation3 + $0x2a0] sm:$0xff]
    %v169 = vld [vmem:[#allocation3 + $0x2a8] sm:$0xff]
    %v170 = vld [vmem:[#allocation3 + $0x2b0] sm:$0xff]
    %v171 = vld [vmem:[#allocation3 + $0x2b8] sm:$0xff]
    %v172 = vld [vmem:[#allocation3 + $0x2c0] sm:$0xff]
    %v173 = vld [vmem:[#allocation3 + $0x2c8] sm:$0xff]
    %v174 = vld [vmem:[#allocation3 + $0x2d0] sm:$0xff]
    %v175 = vld [vmem:[#allocation3 + $0x2d8] sm:$0xff]
    %v176 = vld [vmem:[#allocation3 + $0x2e0] sm:$0xff]
    %v177 = vld [vmem:[#allocation3 + $0x2e8] sm:$0xff]
    %v178 = vld [vmem:[#allocation3 + $0x2f0] sm:$0xff]
    %v179 = vld [vmem:[#allocation3 + $0x2f8] sm:$0xff]
    %v182 = vlaneseq
    %v183 = vshrl.u32 %v182, 7
    %v184 = vsub.s32 0, %v183
    %v185 = vrot.slane %v82, %v184
    %v186 = vlaneseq
    %v187 = vshrl.u32 %v186, 7
    %v188 = vsub.s32 4, %v187
    %v189 = vrot.slane %v82, %v188
    %v190 = vlaneseq
    %v191 = vshrl.u32 %v190, 7
    %v192 = vsub.s32 0, %v191
    %v193 = vrot.slane %v83, %v192
    %v194 = vlaneseq
    %v195 = vshrl.u32 %v194, 7
    %v196 = vsub.s32 4, %v195
    %v197 = vrot.slane %v83, %v196
    %v202 = vlaneseq
    %v203 = vshrl.u32 %v202, 7
    %v204 = vsub.s32 0, %v203
    %v205 = vrot.slane %v185, %v204
    %v206 = vlaneseq
    %v207 = vshrl.u32 %v206, 7
    %v208 = vsub.s32 0, %v207
    %v209 = vrot.slane %v189, %v208
    %v210 = vlaneseq
    %v211 = vshrl.u32 %v210, 7
    %v212 = vsub.s32 0, %v211
    %v213 = vrot.slane %v193, %v212
    %v214 = vlaneseq
    %v215 = vshrl.u32 %v214, 7
    %v216 = vsub.s32 0, %v215
    %v217 = vrot.slane %v197, %v216
    %v218 = vmul.f32 %v84, %v205
    %v219 = vmul.f32 %v85, %v209
    %v220 = vmul.f32 %v86, %v205
    %v221 = vmul.f32 %v87, %v209
    %v222 = vmul.f32 %v88, %v205
    %v223 = vmul.f32 %v89, %v209
    %v224 = vmul.f32 %v90, %v205
    %v225 = vmul.f32 %v91, %v209
    %v226 = vmul.f32 %v92, %v205
    %v227 = vmul.f32 %v93, %v209
    %v228 = vmul.f32 %v94, %v205
    %v229 = vmul.f32 %v95, %v209
    %v230 = vmul.f32 %v96, %v205
    %v231 = vmul.f32 %v97, %v209
    %v232 = vmul.f32 %v98, %v205
    %v233 = vmul.f32 %v99, %v209
    %v234 = vmul.f32 %v100, %v205
    %v235 = vmul.f32 %v101, %v209
    %v236 = vmul.f32 %v102, %v205
    %v237 = vmul.f32 %v103, %v209
    %v238 = vmul.f32 %v104, %v205
    %v239 = vmul.f32 %v105, %v209
    %v240 = vmul.f32 %v106, %v205
    %v241 = vmul.f32 %v107, %v209
    %v242 = vmul.f32 %v108, %v205
    %v243 = vmul.f32 %v109, %v209
    %v244 = vmul.f32 %v110, %v205
    %v245 = vmul.f32 %v111, %v209
    %v246 = vmul.f32 %v112, %v205
    %v247 = vmul.f32 %v113, %v209
    %v248 = vmul.f32 %v114, %v205
    %v249 = vmul.f32 %v115, %v209
    %v250 = vmul.f32 %v84, %v213
    %v251 = vmul.f32 %v85, %v217
    %v252 = vmul.f32 %v86, %v213
    %v253 = vmul.f32 %v87, %v217
    %v254 = vmul.f32 %v88, %v213
    %v255 = vmul.f32 %v89, %v217
    %v256 = vmul.f32 %v90, %v213
    %v257 = vmul.f32 %v91, %v217
    %v258 = vmul.f32 %v92, %v213
    %v259 = vmul.f32 %v93, %v217
    %v260 = vmul.f32 %v94, %v213
    %v261 = vmul.f32 %v95, %v217
    %v262 = vmul.f32 %v96, %v213
    %v263 = vmul.f32 %v97, %v217
    %v264 = vmul.f32 %v98, %v213
    %v265 = vmul.f32 %v99, %v217
    %v266 = vmul.f32 %v100, %v213
    %v267 = vmul.f32 %v101, %v217
    %v268 = vmul.f32 %v102, %v213
    %v269 = vmul.f32 %v103, %v217
    %v270 = vmul.f32 %v104, %v213
    %v271 = vmul.f32 %v105, %v217
    %v272 = vmul.f32 %v106, %v213
    %v273 = vmul.f32 %v107, %v217
    %v274 = vmul.f32 %v108, %v213
    %v275 = vmul.f32 %v109, %v217
    %v276 = vmul.f32 %v110, %v213
    %v277 = vmul.f32 %v111, %v217
    %v278 = vmul.f32 %v112, %v213
    %v279 = vmul.f32 %v113, %v217
    %v280 = vmul.f32 %v114, %v213
    %v281 = vmul.f32 %v115, %v217
    %v282 = vlaneseq
    %v283 = vshrl.u32 %v282, 7
    %v284 = vsub.s32 1, %v283
    %v285 = vrot.slane %v82, %v284
    %v286 = vlaneseq
    %v287 = vshrl.u32 %v286, 7
    %v288 = vsub.s32 5, %v287
    %v289 = vrot.slane %v82, %v288
    %v290 = vlaneseq
    %v291 = vshrl.u32 %v290, 7
    %v292 = vsub.s32 1, %v291
    %v293 = vrot.slane %v83, %v292
    %v294 = vlaneseq
    %v295 = vshrl.u32 %v294, 7
    %v296 = vsub.s32 5, %v295
    %v297 = vrot.slane %v83, %v296
    %v302 = vlaneseq
    %v303 = vshrl.u32 %v302, 7
    %v304 = vsub.s32 1, %v303
    %v305 = vrot.slane %v285, %v304
    %v306 = vlaneseq
    %v307 = vshrl.u32 %v306, 7
    %v308 = vsub.s32 1, %v307
    %v309 = vrot.slane %v289, %v308
    %v310 = vlaneseq
    %v311 = vshrl.u32 %v310, 7
    %v312 = vsub.s32 1, %v311
    %v313 = vrot.slane %v293, %v312
    %v314 = vlaneseq
    %v315 = vshrl.u32 %v314, 7
    %v316 = vsub.s32 1, %v315
    %v317 = vrot.slane %v297, %v316
    %v318 = vmul.f32 %v116, %v305
    %v319 = vmul.f32 %v117, %v309
    %v320 = vmul.f32 %v118, %v305
    %v321 = vmul.f32 %v119, %v309
    %v322 = vmul.f32 %v120, %v305
    %v323 = vmul.f32 %v121, %v309
    %v324 = vmul.f32 %v122, %v305
    %v325 = vmul.f32 %v123, %v309
    %v326 = vmul.f32 %v124, %v305
    %v327 = vmul.f32 %v125, %v309
    %v328 = vmul.f32 %v126, %v305
    %v329 = vmul.f32 %v127, %v309
    %v330 = vmul.f32 %v128, %v305
    %v331 = vmul.f32 %v129, %v309
    %v332 = vmul.f32 %v130, %v305
    %v333 = vmul.f32 %v131, %v309
    %v334 = vmul.f32 %v132, %v305
    %v335 = vmul.f32 %v133, %v309
    %v336 = vmul.f32 %v134, %v305
    %v337 = vmul.f32 %v135, %v309
    %v338 = vmul.f32 %v136, %v305
    %v339 = vmul.f32 %v137, %v309
    %v340 = vmul.f32 %v138, %v305
    %v341 = vmul.f32 %v139, %v309
    %v342 = vmul.f32 %v140, %v305
    %v343 = vmul.f32 %v141, %v309
    %v344 = vmul.f32 %v142, %v305
    %v345 = vmul.f32 %v143, %v309
    %v346 = vmul.f32 %v144, %v305
    %v347 = vmul.f32 %v145, %v309
    %v348 = vmul.f32 %v146, %v305
    %v349 = vmul.f32 %v147, %v309
    %v350 = vmul.f32 %v116, %v313
    %v351 = vmul.f32 %v117, %v317
    %v352 = vmul.f32 %v118, %v313
    %v353 = vmul.f32 %v119, %v317
    %v354 = vmul.f32 %v120, %v313
    %v355 = vmul.f32 %v121, %v317
    %v356 = vmul.f32 %v122, %v313
    %v357 = vmul.f32 %v123, %v317
    %v358 = vmul.f32 %v124, %v313
    %v359 = vmul.f32 %v125, %v317
    %v360 = vmul.f32 %v126, %v313
    %v361 = vmul.f32 %v127, %v317
    %v362 = vmul.f32 %v128, %v313
    %v363 = vmul.f32 %v129, %v317
    %v364 = vmul.f32 %v130, %v313
    %v365 = vmul.f32 %v131, %v317
    %v366 = vmul.f32 %v132, %v313
    %v367 = vmul.f32 %v133, %v317
    %v368 = vmul.f32 %v134, %v313
    %v369 = vmul.f32 %v135, %v317
    %v370 = vmul.f32 %v136, %v313
    %v371 = vmul.f32 %v137, %v317
    %v372 = vmul.f32 %v138, %v313
    %v373 = vmul.f32 %v139, %v317
    %v374 = vmul.f32 %v140, %v313
    %v375 = vmul.f32 %v141, %v317
    %v376 = vmul.f32 %v142, %v313
    %v377 = vmul.f32 %v143, %v317
    %v378 = vmul.f32 %v144, %v313
    %v379 = vmul.f32 %v145, %v317
    %v380 = vmul.f32 %v146, %v313
    %v381 = vmul.f32 %v147, %v317
    %v382 = vadd.f32 %v218, %v318
    %v383 = vadd.f32 %v219, %v319
    %v384 = vadd.f32 %v220, %v320
    %v385 = vadd.f32 %v221, %v321
    %v386 = vadd.f32 %v222, %v322
    %v387 = vadd.f32 %v223, %v323
    %v388 = vadd.f32 %v224, %v324
    %v389 = vadd.f32 %v225, %v325
    %v390 = vadd.f32 %v226, %v326
    %v391 = vadd.f32 %v227, %v327
    %v392 = vadd.f32 %v228, %v328
    %v393 = vadd.f32 %v229, %v329
    %v394 = vadd.f32 %v230, %v330
    %v395 = vadd.f32 %v231, %v331
    %v396 = vadd.f32 %v232, %v332
    %v397 = vadd.f32 %v233, %v333
    %v398 = vadd.f32 %v234, %v334
    %v399 = vadd.f32 %v235, %v335
    %v400 = vadd.f32 %v236, %v336
    %v401 = vadd.f32 %v237, %v337
    %v402 = vadd.f32 %v238, %v338
    %v403 = vadd.f32 %v239, %v339
    %v404 = vadd.f32 %v240, %v340
    %v405 = vadd.f32 %v241, %v341
    %v406 = vadd.f32 %v242, %v342
    %v407 = vadd.f32 %v243, %v343
    %v408 = vadd.f32 %v244, %v344
    %v409 = vadd.f32 %v245, %v345
    %v410 = vadd.f32 %v246, %v346
    %v411 = vadd.f32 %v247, %v347
    %v412 = vadd.f32 %v248, %v348
    %v413 = vadd.f32 %v249, %v349
    %v414 = vadd.f32 %v250, %v350
    %v415 = vadd.f32 %v251, %v351
    %v416 = vadd.f32 %v252, %v352
    %v417 = vadd.f32 %v253, %v353
    %v418 = vadd.f32 %v254, %v354
    %v419 = vadd.f32 %v255, %v355
    %v420 = vadd.f32 %v256, %v356
    %v421 = vadd.f32 %v257, %v357
    %v422 = vadd.f32 %v258, %v358
    %v423 = vadd.f32 %v259, %v359
    %v424 = vadd.f32 %v260, %v360
    %v425 = vadd.f32 %v261, %v361
    %v426 = vadd.f32 %v262, %v362
    %v427 = vadd.f32 %v263, %v363
    %v428 = vadd.f32 %v264, %v364
    %v429 = vadd.f32 %v265, %v365
    %v430 = vadd.f32 %v266, %v366
    %v431 = vadd.f32 %v267, %v367
    %v432 = vadd.f32 %v268, %v368
    %v433 = vadd.f32 %v269, %v369
    %v434 = vadd.f32 %v270, %v370
    %v435 = vadd.f32 %v271, %v371
    %v436 = vadd.f32 %v272, %v372
    %v437 = vadd.f32 %v273, %v373
    %v438 = vadd.f32 %v274, %v374
    %v439 = vadd.f32 %v275, %v375
    %v440 = vadd.f32 %v276, %v376
    %v441 = vadd.f32 %v277, %v377
    %v442 = vadd.f32 %v278, %v378
    %v443 = vadd.f32 %v279, %v379
    %v444 = vadd.f32 %v280, %v380
    %v445 = vadd.f32 %v281, %v381
    %v446 = vlaneseq
    %v447 = vshrl.u32 %v446, 7
    %v448 = vsub.s32 2, %v447
    %v449 = vrot.slane %v82, %v448
    %v450 = vlaneseq
    %v451 = vshrl.u32 %v450, 7
    %v452 = vsub.s32 6, %v451
    %v453 = vrot.slane %v82, %v452
    %v454 = vlaneseq
    %v455 = vshrl.u32 %v454, 7
    %v456 = vsub.s32 2, %v455
    %v457 = vrot.slane %v83, %v456
    %v458 = vlaneseq
    %v459 = vshrl.u32 %v458, 7
    %v460 = vsub.s32 6, %v459
    %v461 = vrot.slane %v83, %v460
    %v466 = vlaneseq
    %v467 = vshrl.u32 %v466, 7
    %v468 = vsub.s32 2, %v467
    %v469 = vrot.slane %v449, %v468
    %v470 = vlaneseq
    %v471 = vshrl.u32 %v470, 7
    %v472 = vsub.s32 2, %v471
    %v473 = vrot.slane %v453, %v472
    %v474 = vlaneseq
    %v475 = vshrl.u32 %v474, 7
    %v476 = vsub.s32 2, %v475
    %v477 = vrot.slane %v457, %v476
    %v478 = vlaneseq
    %v479 = vshrl.u32 %v478, 7
    %v480 = vsub.s32 2, %v479
    %v481 = vrot.slane %v461, %v480
    %v482 = vmul.f32 %v148, %v469
    %v483 = vmul.f32 %v149, %v473
    %v484 = vmul.f32 %v150, %v469
    %v485 = vmul.f32 %v151, %v473
    %v486 = vmul.f32 %v152, %v469
    %v487 = vmul.f32 %v153, %v473
    %v488 = vmul.f32 %v154, %v469
    %v489 = vmul.f32 %v155, %v473
    %v490 = vmul.f32 %v156, %v469
    %v491 = vmul.f32 %v157, %v473
    %v492 = vmul.f32 %v158, %v469
    %v493 = vmul.f32 %v159, %v473
    %v494 = vmul.f32 %v160, %v469
    %v495 = vmul.f32 %v161, %v473
    %v496 = vmul.f32 %v162, %v469
    %v497 = vmul.f32 %v163, %v473
    %v498 = vmul.f32 %v164, %v469
    %v499 = vmul.f32 %v165, %v473
    %v500 = vmul.f32 %v166, %v469
    %v501 = vmul.f32 %v167, %v473
    %v502 = vmul.f32 %v168, %v469
    %v503 = vmul.f32 %v169, %v473
    %v504 = vmul.f32 %v170, %v469
    %v505 = vmul.f32 %v171, %v473
    %v506 = vmul.f32 %v172, %v469
    %v507 = vmul.f32 %v173, %v473
    %v508 = vmul.f32 %v174, %v469
    %v509 = vmul.f32 %v175, %v473
    %v510 = vmul.f32 %v176, %v469
    %v511 = vmul.f32 %v177, %v473
    %v512 = vmul.f32 %v178, %v469
    %v513 = vmul.f32 %v179, %v473
    %v514 = vmul.f32 %v148, %v477
    %v515 = vmul.f32 %v149, %v481
    %v516 = vmul.f32 %v150, %v477
    %v517 = vmul.f32 %v151, %v481
    %v518 = vmul.f32 %v152, %v477
    %v519 = vmul.f32 %v153, %v481
    %v520 = vmul.f32 %v154, %v477
    %v521 = vmul.f32 %v155, %v481
    %v522 = vmul.f32 %v156, %v477
    %v523 = vmul.f32 %v157, %v481
    %v524 = vmul.f32 %v158, %v477
    %v525 = vmul.f32 %v159, %v481
    %v526 = vmul.f32 %v160, %v477
    %v527 = vmul.f32 %v161, %v481
    %v528 = vmul.f32 %v162, %v477
    %v529 = vmul.f32 %v163, %v481
    %v530 = vmul.f32 %v164, %v477
    %v531 = vmul.f32 %v165, %v481
    %v532 = vmul.f32 %v166, %v477
    %v533 = vmul.f32 %v167, %v481
    %v534 = vmul.f32 %v168, %v477
    %v535 = vmul.f32 %v169, %v481
    %v536 = vmul.f32 %v170, %v477
    %v537 = vmul.f32 %v171, %v481
    %v538 = vmul.f32 %v172, %v477
    %v539 = vmul.f32 %v173, %v481
    %v540 = vmul.f32 %v174, %v477
    %v541 = vmul.f32 %v175, %v481
    %v542 = vmul.f32 %v176, %v477
    %v543 = vmul.f32 %v177, %v481
    %v544 = vmul.f32 %v178, %v477
    %v545 = vmul.f32 %v179, %v481
    %v546 = vadd.f32 %v382, %v482
    %v547 = vadd.f32 %v383, %v483
    %v548 = vadd.f32 %v384, %v484
    %v549 = vadd.f32 %v385, %v485
    %v550 = vadd.f32 %v386, %v486
    %v551 = vadd.f32 %v387, %v487
    %v552 = vadd.f32 %v388, %v488
    %v553 = vadd.f32 %v389, %v489
    %v554 = vadd.f32 %v390, %v490
    %v555 = vadd.f32 %v391, %v491
    %v556 = vadd.f32 %v392, %v492
    %v557 = vadd.f32 %v393, %v493
    %v558 = vadd.f32 %v394, %v494
    %v559 = vadd.f32 %v395, %v495
    %v560 = vadd.f32 %v396, %v496
    %v561 = vadd.f32 %v397, %v497
    %v562 = vadd.f32 %v398, %v498
    %v563 = vadd.f32 %v399, %v499
    %v564 = vadd.f32 %v400, %v500
    %v565 = vadd.f32 %v401, %v501
    %v566 = vadd.f32 %v402, %v502
    %v567 = vadd.f32 %v403, %v503
    %v568 = vadd.f32 %v404, %v504
    %v569 = vadd.f32 %v405, %v505
    %v570 = vadd.f32 %v406, %v506
    %v571 = vadd.f32 %v407, %v507
    %v572 = vadd.f32 %v408, %v508
    %v573 = vadd.f32 %v409, %v509
    %v574 = vadd.f32 %v410, %v510
    %v575 = vadd.f32 %v411, %v511
    %v576 = vadd.f32 %v412, %v512
    %v577 = vadd.f32 %v413, %v513
    %v578 = vadd.f32 %v414, %v514
    %v579 = vadd.f32 %v415, %v515
    %v580 = vadd.f32 %v416, %v516
    %v581 = vadd.f32 %v417, %v517
    %v582 = vadd.f32 %v418, %v518
    %v583 = vadd.f32 %v419, %v519
    %v584 = vadd.f32 %v420, %v520
    %v585 = vadd.f32 %v421, %v521
    %v586 = vadd.f32 %v422, %v522
    %v587 = vadd.f32 %v423, %v523
    %v588 = vadd.f32 %v424, %v524
    %v589 = vadd.f32 %v425, %v525
    %v590 = vadd.f32 %v426, %v526
    %v591 = vadd.f32 %v427, %v527
    %v592 = vadd.f32 %v428, %v528
    %v593 = vadd.f32 %v429, %v529
    %v594 = vadd.f32 %v430, %v530
    %v595 = vadd.f32 %v431, %v531
    %v596 = vadd.f32 %v432, %v532
    %v597 = vadd.f32 %v433, %v533
    %v598 = vadd.f32 %v434, %v534
    %v599 = vadd.f32 %v435, %v535
    %v600 = vadd.f32 %v436, %v536
    %v601 = vadd.f32 %v437, %v537
    %v602 = vadd.f32 %v438, %v538
    %v603 = vadd.f32 %v439, %v539
    %v604 = vadd.f32 %v440, %v540
    %v605 = vadd.f32 %v441, %v541
    %v606 = vadd.f32 %v442, %v542
    %v607 = vadd.f32 %v443, %v543
    %v608 = vadd.f32 %v444, %v544
    %v609 = vadd.f32 %v445, %v545
    %v610 = vmax.f32 %v546, 0.0
    %v611 = vmax.f32 %v547, 0.0
    %v612 = vmax.f32 %v548, 0.0
    %v613 = vmax.f32 %v549, 0.0
    %v614 = vmax.f32 %v550, 0.0
    %v615 = vmax.f32 %v551, 0.0
    %v616 = vmax.f32 %v552, 0.0
    %v617 = vmax.f32 %v553, 0.0
    %v618 = vmax.f32 %v554, 0.0
    %v619 = vmax.f32 %v555, 0.0
    %v620 = vmax.f32 %v556, 0.0
    %v621 = vmax.f32 %v557, 0.0
    %v622 = vmax.f32 %v558, 0.0
    %v623 = vmax.f32 %v559, 0.0
    %v624 = vmax.f32 %v560, 0.0
    %v625 = vmax.f32 %v561, 0.0
    %v626 = vmax.f32 %v562, 0.0
    %v627 = vmax.f32 %v563, 0.0
    %v628 = vmax.f32 %v564, 0.0
    %v629 = vmax.f32 %v565, 0.0
    %v630 = vmax.f32 %v566, 0.0
    %v631 = vmax.f32 %v567, 0.0
    %v632 = vmax.f32 %v568, 0.0
    %v633 = vmax.f32 %v569, 0.0
    %v634 = vmax.f32 %v570, 0.0
    %v635 = vmax.f32 %v571, 0.0
    %v636 = vmax.f32 %v572, 0.0
    %v637 = vmax.f32 %v573, 0.0
    %v638 = vmax.f32 %v574, 0.0
    %v639 = vmax.f32 %v575, 0.0
    %v640 = vmax.f32 %v576, 0.0
    %v641 = vmax.f32 %v577, 0.0
    %v642 = vmax.f32 %v578, 0.0
    %v643 = vmax.f32 %v579, 0.0
    %v644 = vmax.f32 %v580, 0.0
    %v645 = vmax.f32 %v581, 0.0
    %v646 = vmax.f32 %v582, 0.0
    %v647 = vmax.f32 %v583, 0.0
    %v648 = vmax.f32 %v584, 0.0
    %v649 = vmax.f32 %v585, 0.0
    %v650 = vmax.f32 %v586, 0.0
    %v651 = vmax.f32 %v587, 0.0
    %v652 = vmax.f32 %v588, 0.0
    %v653 = vmax.f32 %v589, 0.0
    %v654 = vmax.f32 %v590, 0.0
    %v655 = vmax.f32 %v591, 0.0
    %v656 = vmax.f32 %v592, 0.0
    %v657 = vmax.f32 %v593, 0.0
    %v658 = vmax.f32 %v594, 0.0
    %v659 = vmax.f32 %v595, 0.0
    %v660 = vmax.f32 %v596, 0.0
    %v661 = vmax.f32 %v597, 0.0
    %v662 = vmax.f32 %v598, 0.0
    %v663 = vmax.f32 %v599, 0.0
    %v664 = vmax.f32 %v600, 0.0
    %v665 = vmax.f32 %v601, 0.0
    %v666 = vmax.f32 %v602, 0.0
    %v667 = vmax.f32 %v603, 0.0
    %v668 = vmax.f32 %v604, 0.0
    %v669 = vmax.f32 %v605, 0.0
    %v670 = vmax.f32 %v606, 0.0
    %v671 = vmax.f32 %v607, 0.0
    %v672 = vmax.f32 %v608, 0.0
    %v673 = vmax.f32 %v609, 0.0
    %v674 = vmul.f32 %v610, %v610
    %v675 = vmul.f32 %v611, %v611
    %v676 = vmul.f32 %v612, %v612
    %v677 = vmul.f32 %v613, %v613
    %v678 = vmul.f32 %v614, %v614
    %v679 = vmul.f32 %v615, %v615
    %v680 = vmul.f32 %v616, %v616
    %v681 = vmul.f32 %v617, %v617
    %v682 = vmul.f32 %v618, %v618
    %v683 = vmul.f32 %v619, %v619
    %v684 = vmul.f32 %v620, %v620
    %v685 = vmul.f32 %v621, %v621
    %v686 = vmul.f32 %v622, %v622
    %v687 = vmul.f32 %v623, %v623
    %v688 = vmul.f32 %v624, %v624
    %v689 = vmul.f32 %v625, %v625
    %v690 = vmul.f32 %v626, %v626
    %v691 = vmul.f32 %v627, %v627
    %v692 = vmul.f32 %v628, %v628
    %v693 = vmul.f32 %v629, %v629
    %v694 = vmul.f32 %v630, %v630
    %v695 = vmul.f32 %v631, %v631
    %v696 = vmul.f32 %v632, %v632
    %v697 = vmul.f32 %v633, %v633
    %v698 = vmul.f32 %v634, %v634
    %v699 = vmul.f32 %v635, %v635
    %v700 = vmul.f32 %v636, %v636
    %v701 = vmul.f32 %v637, %v637
    %v702 = vmul.f32 %v638, %v638
    %v703 = vmul.f32 %v639, %v639
    %v704 = vmul.f32 %v640, %v640
    %v705 = vmul.f32 %v641, %v641
    %v706 = vmul.f32 %v642, %v642
    %v707 = vmul.f32 %v643, %v643
    %v708 = vmul.f32 %v644, %v644
    %v709 = vmul.f32 %v645, %v645
    %v710 = vmul.f32 %v646, %v646
    %v711 = vmul.f32 %v647, %v647
    %v712 = vmul.f32 %v648, %v648
    %v713 = vmul.f32 %v649, %v649
    %v714 = vmul.f32 %v650, %v650
    %v715 = vmul.f32 %v651, %v651
    %v716 = vmul.f32 %v652, %v652
    %v717 = vmul.f32 %v653, %v653
    %v718 = vmul.f32 %v654, %v654
    %v719 = vmul.f32 %v655, %v655
    %v720 = vmul.f32 %v656, %v656
    %v721 = vmul.f32 %v657, %v657
    %v722 = vmul.f32 %v658, %v658
    %v723 = vmul.f32 %v659, %v659
    %v724 = vmul.f32 %v660, %v660
    %v725 = vmul.f32 %v661, %v661
    %v726 = vmul.f32 %v662, %v662
    %v727 = vmul.f32 %v663, %v663
    %v728 = vmul.f32 %v664, %v664
    %v729 = vmul.f32 %v665, %v665
    %v730 = vmul.f32 %v666, %v666
    %v731 = vmul.f32 %v667, %v667
    %v732 = vmul.f32 %v668, %v668
    %v733 = vmul.f32 %v669, %v669
    %v734 = vmul.f32 %v670, %v670
    %v735 = vmul.f32 %v671, %v671
    %v736 = vmul.f32 %v672, %v672
    %v737 = vmul.f32 %v673, %v673
    %v738 = vadd.f32 %v674, %v676
    %v739 = vadd.f32 %v738, %v678
    %v740 = vadd.f32 %v739, %v680
    %v741 = vadd.f32 %v740, %v682
    %v742 = vadd.f32 %v741, %v684
    %v743 = vadd.f32 %v742, %v686
    %v744 = vadd.f32 %v743, %v688
    %v745 = vadd.f32 %v744, %v690
    %v746 = vadd.f32 %v745, %v692
    %v747 = vadd.f32 %v746, %v694
    %v748 = vadd.f32 %v747, %v696
    %v749 = vadd.f32 %v748, %v698
    %v750 = vadd.f32 %v749, %v700
    %v751 = vadd.f32 %v750, %v702
    %v752 = vadd.f32 %v751, %v704
    %v753 = vrot.slane %v752, 4
    %v754 = vadd.f32 %v752, %v753
    %v755 = vrot.slane %v754, 2
    %v756 = vadd.f32 %v754, %v755
    %v757 = vrot.slane %v756, 1
    %v758 = vadd.f32 %v756, %v757
    %v759 = vadd.f32 %v675, %v677
    %v760 = vadd.f32 %v759, %v679
    %v761 = vadd.f32 %v760, %v681
    %v762 = vadd.f32 %v761, %v683
    %v763 = vadd.f32 %v762, %v685
    %v764 = vadd.f32 %v763, %v687
    %v765 = vadd.f32 %v764, %v689
    %v766 = vadd.f32 %v765, %v691
    %v767 = vadd.f32 %v766, %v693
    %v768 = vadd.f32 %v767, %v695
    %v769 = vadd.f32 %v768, %v697
    %v770 = vadd.f32 %v769, %v699
    %v771 = vadd.f32 %v770, %v701
    %v772 = vadd.f32 %v771, %v703
    %v773 = vadd.f32 %v772, %v705
    %v774 = vrot.slane %v773, 4
    %v775 = vadd.f32 %v773, %v774
    %v776 = vrot.slane %v775, 2
    %v777 = vadd.f32 %v775, %v776
    %v778 = vrot.slane %v777, 1
    %v779 = vadd.f32 %v777, %v778
    %v780 = vadd.f32 %v706, %v708
    %v781 = vadd.f32 %v780, %v710
    %v782 = vadd.f32 %v781, %v712
    %v783 = vadd.f32 %v782, %v714
    %v784 = vadd.f32 %v783, %v716
    %v785 = vadd.f32 %v784, %v718
    %v786 = vadd.f32 %v785, %v720
    %v787 = vadd.f32 %v786, %v722
    %v788 = vadd.f32 %v787, %v724
    %v789 = vadd.f32 %v788, %v726
    %v790 = vadd.f32 %v789, %v728
    %v791 = vadd.f32 %v790, %v730
    %v792 = vadd.f32 %v791, %v732
    %v793 = vadd.f32 %v792, %v734
    %v794 = vadd.f32 %v793, %v736
    %v795 = vrot.slane %v794, 4
    %v796 = vadd.f32 %v794, %v795
    %v797 = vrot.slane %v796, 2
    %v798 = vadd.f32 %v796, %v797
    %v799 = vrot.slane %v798, 1
    %v800 = vadd.f32 %v798, %v799
    %v801 = vadd.f32 %v707, %v709
    %v802 = vadd.f32 %v801, %v711
    %v803 = vadd.f32 %v802, %v713
    %v804 = vadd.f32 %v803, %v715
    %v805 = vadd.f32 %v804, %v717
    %v806 = vadd.f32 %v805, %v719
    %v807 = vadd.f32 %v806, %v721
    %v808 = vadd.f32 %v807, %v723
    %v809 = vadd.f32 %v808, %v725
    %v810 = vadd.f32 %v809, %v727
    %v811 = vadd.f32 %v810, %v729
    %v812 = vadd.f32 %v811, %v731
    %v813 = vadd.f32 %v812, %v733
    %v814 = vadd.f32 %v813, %v735
    %v815 = vadd.f32 %v814, %v737
    %v816 = vrot.slane %v815, 4
    %v817 = vadd.f32 %v815, %v816
    %v818 = vrot.slane %v817, 2
    %v819 = vadd.f32 %v817, %v818
    %v820 = vrot.slane %v819, 1
    %v821 = vadd.f32 %v819, %v820
    %v822 = vmax.f32 %v758, 1e-24
    %v823 = vmax.f32 %v779, 1e-24
    %v824 = vmax.f32 %v800, 1e-24
    %v825 = vmax.f32 %v821, 1e-24
    %v826 = vrsqrt.pop %v822
    %v827 = vrsqrt.pop %v823
    %v828 = vrsqrt.pop %v824
    %v829 = vrsqrt.pop %v825
    %v830 = vmul.f32 %v610, %v826
    %v831 = vmul.f32 %v611, %v827
    %v832 = vmul.f32 %v612, %v826
    %v833 = vmul.f32 %v613, %v827
    %v834 = vmul.f32 %v614, %v826
    %v835 = vmul.f32 %v615, %v827
    %v836 = vmul.f32 %v616, %v826
    %v837 = vmul.f32 %v617, %v827
    %v838 = vmul.f32 %v618, %v826
    %v839 = vmul.f32 %v619, %v827
    %v840 = vmul.f32 %v620, %v826
    %v841 = vmul.f32 %v621, %v827
    %v842 = vmul.f32 %v622, %v826
    %v843 = vmul.f32 %v623, %v827
    %v844 = vmul.f32 %v624, %v826
    %v845 = vmul.f32 %v625, %v827
    %v846 = vmul.f32 %v626, %v826
    %v847 = vmul.f32 %v627, %v827
    %v848 = vmul.f32 %v628, %v826
    %v849 = vmul.f32 %v629, %v827
    %v850 = vmul.f32 %v630, %v826
    %v851 = vmul.f32 %v631, %v827
    %v852 = vmul.f32 %v632, %v826
    %v853 = vmul.f32 %v633, %v827
    %v854 = vmul.f32 %v634, %v826
    %v855 = vmul.f32 %v635, %v827
    %v856 = vmul.f32 %v636, %v826
    %v857 = vmul.f32 %v637, %v827
    %v858 = vmul.f32 %v638, %v826
    %v859 = vmul.f32 %v639, %v827
    %v860 = vmul.f32 %v640, %v826
    %v861 = vmul.f32 %v641, %v827
    %v862 = vmul.f32 %v642, %v828
    %v863 = vmul.f32 %v643, %v829
    %v864 = vmul.f32 %v644, %v828
    %v865 = vmul.f32 %v645, %v829
    %v866 = vmul.f32 %v646, %v828
    %v867 = vmul.f32 %v647, %v829
    %v868 = vmul.f32 %v648, %v828
    %v869 = vmul.f32 %v649, %v829
    %v870 = vmul.f32 %v650, %v828
    %v871 = vmul.f32 %v651, %v829
    %v872 = vmul.f32 %v652, %v828
    %v873 = vmul.f32 %v653, %v829
    %v874 = vmul.f32 %v654, %v828
    %v875 = vmul.f32 %v655, %v829
    %v876 = vmul.f32 %v656, %v828
    %v877 = vmul.f32 %v657, %v829
    %v878 = vmul.f32 %v658, %v828
    %v879 = vmul.f32 %v659, %v829
    %v880 = vmul.f32 %v660, %v828
    %v881 = vmul.f32 %v661, %v829
    %v882 = vmul.f32 %v662, %v828
    %v883 = vmul.f32 %v663, %v829
    %v884 = vmul.f32 %v664, %v828
    %v885 = vmul.f32 %v665, %v829
    %v886 = vmul.f32 %v666, %v828
    %v887 = vmul.f32 %v667, %v829
    %v888 = vmul.f32 %v668, %v828
    %v889 = vmul.f32 %v669, %v829
    %v890 = vmul.f32 %v670, %v828
    %v891 = vmul.f32 %v671, %v829
    %v892 = vmul.f32 %v672, %v828
    %v893 = vmul.f32 %v673, %v829
    %v894 = vmax.f32 %v830, 1e-06
    %v895 = vmax.f32 %v831, 1e-06
    %v896 = vmax.f32 %v832, 1e-06
    %v897 = vmax.f32 %v833, 1e-06
    %v898 = vmax.f32 %v834, 1e-06
    %v899 = vmax.f32 %v835, 1e-06
    %v900 = vmax.f32 %v836, 1e-06
    %v901 = vmax.f32 %v837, 1e-06
    %v902 = vmax.f32 %v838, 1e-06
    %v903 = vmax.f32 %v839, 1e-06
    %v904 = vmax.f32 %v840, 1e-06
    %v905 = vmax.f32 %v841, 1e-06
    %v906 = vmax.f32 %v842, 1e-06
    %v907 = vmax.f32 %v843, 1e-06
    %v908 = vmax.f32 %v844, 1e-06
    %v909 = vmax.f32 %v845, 1e-06
    %v910 = vmax.f32 %v846, 1e-06
    %v911 = vmax.f32 %v847, 1e-06
    %v912 = vmax.f32 %v848, 1e-06
    %v913 = vmax.f32 %v849, 1e-06
    %v914 = vmax.f32 %v850, 1e-06
    %v915 = vmax.f32 %v851, 1e-06
    %v916 = vmax.f32 %v852, 1e-06
    %v917 = vmax.f32 %v853, 1e-06
    %v918 = vmax.f32 %v854, 1e-06
    %v919 = vmax.f32 %v855, 1e-06
    %v920 = vmax.f32 %v856, 1e-06
    %v921 = vmax.f32 %v857, 1e-06
    %v922 = vmax.f32 %v858, 1e-06
    %v923 = vmax.f32 %v859, 1e-06
    %v924 = vmax.f32 %v860, 1e-06
    %v925 = vmax.f32 %v861, 1e-06
    %v926 = vmax.f32 %v862, 1e-06
    %v927 = vmax.f32 %v863, 1e-06
    %v928 = vmax.f32 %v864, 1e-06
    %v929 = vmax.f32 %v865, 1e-06
    %v930 = vmax.f32 %v866, 1e-06
    %v931 = vmax.f32 %v867, 1e-06
    %v932 = vmax.f32 %v868, 1e-06
    %v933 = vmax.f32 %v869, 1e-06
    %v934 = vmax.f32 %v870, 1e-06
    %v935 = vmax.f32 %v871, 1e-06
    %v936 = vmax.f32 %v872, 1e-06
    %v937 = vmax.f32 %v873, 1e-06
    %v938 = vmax.f32 %v874, 1e-06
    %v939 = vmax.f32 %v875, 1e-06
    %v940 = vmax.f32 %v876, 1e-06
    %v941 = vmax.f32 %v877, 1e-06
    %v942 = vmax.f32 %v878, 1e-06
    %v943 = vmax.f32 %v879, 1e-06
    %v944 = vmax.f32 %v880, 1e-06
    %v945 = vmax.f32 %v881, 1e-06
    %v946 = vmax.f32 %v882, 1e-06
    %v947 = vmax.f32 %v883, 1e-06
    %v948 = vmax.f32 %v884, 1e-06
    %v949 = vmax.f32 %v885, 1e-06
    %v950 = vmax.f32 %v886, 1e-06
    %v951 = vmax.f32 %v887, 1e-06
    %v952 = vmax.f32 %v888, 1e-06
    %v953 = vmax.f32 %v889, 1e-06
    %v954 = vmax.f32 %v890, 1e-06
    %v955 = vmax.f32 %v891, 1e-06
    %v956 = vmax.f32 %v892, 1e-06
    %v957 = vmax.f32 %v893, 1e-06
    %v958 = vmul.f32 %v894, %v894
    %v959 = vmul.f32 %v895, %v895
    %v960 = vmul.f32 %v896, %v896
    %v961 = vmul.f32 %v897, %v897
    %v962 = vmul.f32 %v898, %v898
    %v963 = vmul.f32 %v899, %v899
    %v964 = vmul.f32 %v900, %v900
    %v965 = vmul.f32 %v901, %v901
    %v966 = vmul.f32 %v902, %v902
    %v967 = vmul.f32 %v903, %v903
    %v968 = vmul.f32 %v904, %v904
    %v969 = vmul.f32 %v905, %v905
    %v970 = vmul.f32 %v906, %v906
    %v971 = vmul.f32 %v907, %v907
    %v972 = vmul.f32 %v908, %v908
    %v973 = vmul.f32 %v909, %v909
    %v974 = vmul.f32 %v910, %v910
    %v975 = vmul.f32 %v911, %v911
    %v976 = vmul.f32 %v912, %v912
    %v977 = vmul.f32 %v913, %v913
    %v978 = vmul.f32 %v914, %v914
    %v979 = vmul.f32 %v915, %v915
    %v980 = vmul.f32 %v916, %v916
    %v981 = vmul.f32 %v917, %v917
    %v982 = vmul.f32 %v918, %v918
    %v983 = vmul.f32 %v919, %v919
    %v984 = vmul.f32 %v920, %v920
    %v985 = vmul.f32 %v921, %v921
    %v986 = vmul.f32 %v922, %v922
    %v987 = vmul.f32 %v923, %v923
    %v988 = vmul.f32 %v924, %v924
    %v989 = vmul.f32 %v925, %v925
    %v990 = vmul.f32 %v926, %v926
    %v991 = vmul.f32 %v927, %v927
    %v992 = vmul.f32 %v928, %v928
    %v993 = vmul.f32 %v929, %v929
    %v994 = vmul.f32 %v930, %v930
    %v995 = vmul.f32 %v931, %v931
    %v996 = vmul.f32 %v932, %v932
    %v997 = vmul.f32 %v933, %v933
    %v998 = vmul.f32 %v934, %v934
    %v999 = vmul.f32 %v935, %v935
    %v1000 = vmul.f32 %v936, %v936
    %v1001 = vmul.f32 %v937, %v937
    %v1002 = vmul.f32 %v938, %v938
    %v1003 = vmul.f32 %v939, %v939
    %v1004 = vmul.f32 %v940, %v940
    %v1005 = vmul.f32 %v941, %v941
    %v1006 = vmul.f32 %v942, %v942
    %v1007 = vmul.f32 %v943, %v943
    %v1008 = vmul.f32 %v944, %v944
    %v1009 = vmul.f32 %v945, %v945
    %v1010 = vmul.f32 %v946, %v946
    %v1011 = vmul.f32 %v947, %v947
    %v1012 = vmul.f32 %v948, %v948
    %v1013 = vmul.f32 %v949, %v949
    %v1014 = vmul.f32 %v950, %v950
    %v1015 = vmul.f32 %v951, %v951
    %v1016 = vmul.f32 %v952, %v952
    %v1017 = vmul.f32 %v953, %v953
    %v1018 = vmul.f32 %v954, %v954
    %v1019 = vmul.f32 %v955, %v955
    %v1020 = vmul.f32 %v956, %v956
    %v1021 = vmul.f32 %v957, %v957
    %v1022 = vmul.f32 %v958, %v894
    %v1023 = vmul.f32 %v959, %v895
    %v1024 = vmul.f32 %v960, %v896
    %v1025 = vmul.f32 %v961, %v897
    %v1026 = vmul.f32 %v962, %v898
    %v1027 = vmul.f32 %v963, %v899
    %v1028 = vmul.f32 %v964, %v900
    %v1029 = vmul.f32 %v965, %v901
    %v1030 = vmul.f32 %v966, %v902
    %v1031 = vmul.f32 %v967, %v903
    %v1032 = vmul.f32 %v968, %v904
    %v1033 = vmul.f32 %v969, %v905
    %v1034 = vmul.f32 %v970, %v906
    %v1035 = vmul.f32 %v971, %v907
    %v1036 = vmul.f32 %v972, %v908
    %v1037 = vmul.f32 %v973, %v909
    %v1038 = vmul.f32 %v974, %v910
    %v1039 = vmul.f32 %v975, %v911
    %v1040 = vmul.f32 %v976, %v912
    %v1041 = vmul.f32 %v977, %v913
    %v1042 = vmul.f32 %v978, %v914
    %v1043 = vmul.f32 %v979, %v915
    %v1044 = vmul.f32 %v980, %v916
    %v1045 = vmul.f32 %v981, %v917
    %v1046 = vmul.f32 %v982, %v918
    %v1047 = vmul.f32 %v983, %v919
    %v1048 = vmul.f32 %v984, %v920
    %v1049 = vmul.f32 %v985, %v921
    %v1050 = vmul.f32 %v986, %v922
    %v1051 = vmul.f32 %v987, %v923
    %v1052 = vmul.f32 %v988, %v924
    %v1053 = vmul.f32 %v989, %v925
    %v1054 = vmul.f32 %v990, %v926
    %v1055 = vmul.f32 %v991, %v927
    %v1056 = vmul.f32 %v992, %v928
    %v1057 = vmul.f32 %v993, %v929
    %v1058 = vmul.f32 %v994, %v930
    %v1059 = vmul.f32 %v995, %v931
    %v1060 = vmul.f32 %v996, %v932
    %v1061 = vmul.f32 %v997, %v933
    %v1062 = vmul.f32 %v998, %v934
    %v1063 = vmul.f32 %v999, %v935
    %v1064 = vmul.f32 %v1000, %v936
    %v1065 = vmul.f32 %v1001, %v937
    %v1066 = vmul.f32 %v1002, %v938
    %v1067 = vmul.f32 %v1003, %v939
    %v1068 = vmul.f32 %v1004, %v940
    %v1069 = vmul.f32 %v1005, %v941
    %v1070 = vmul.f32 %v1006, %v942
    %v1071 = vmul.f32 %v1007, %v943
    %v1072 = vmul.f32 %v1008, %v944
    %v1073 = vmul.f32 %v1009, %v945
    %v1074 = vmul.f32 %v1010, %v946
    %v1075 = vmul.f32 %v1011, %v947
    %v1076 = vmul.f32 %v1012, %v948
    %v1077 = vmul.f32 %v1013, %v949
    %v1078 = vmul.f32 %v1014, %v950
    %v1079 = vmul.f32 %v1015, %v951
    %v1080 = vmul.f32 %v1016, %v952
    %v1081 = vmul.f32 %v1017, %v953
    %v1082 = vmul.f32 %v1018, %v954
    %v1083 = vmul.f32 %v1019, %v955
    %v1084 = vmul.f32 %v1020, %v956
    %v1085 = vmul.f32 %v1021, %v957
    %v1086 = vadd.f32 %v1022, %v1023
    %v1087 = vadd.f32 %v1024, %v1025
    %v1088 = vadd.f32 %v1026, %v1027
    %v1089 = vadd.f32 %v1028, %v1029
    %v1090 = vadd.f32 %v1030, %v1031
    %v1091 = vadd.f32 %v1032, %v1033
    %v1092 = vadd.f32 %v1034, %v1035
    %v1093 = vadd.f32 %v1036, %v1037
    %v1094 = vadd.f32 %v1038, %v1039
    %v1095 = vadd.f32 %v1040, %v1041
    %v1096 = vadd.f32 %v1042, %v1043
    %v1097 = vadd.f32 %v1044, %v1045
    %v1098 = vadd.f32 %v1046, %v1047
    %v1099 = vadd.f32 %v1048, %v1049
    %v1100 = vadd.f32 %v1050, %v1051
    %v1101 = vadd.f32 %v1052, %v1053
    %v1102 = vadd.f32 %v1054, %v1055
    %v1103 = vadd.f32 %v1056, %v1057
    %v1104 = vadd.f32 %v1058, %v1059
    %v1105 = vadd.f32 %v1060, %v1061
    %v1106 = vadd.f32 %v1062, %v1063
    %v1107 = vadd.f32 %v1064, %v1065
    %v1108 = vadd.f32 %v1066, %v1067
    %v1109 = vadd.f32 %v1068, %v1069
    %v1110 = vadd.f32 %v1070, %v1071
    %v1111 = vadd.f32 %v1072, %v1073
    %v1112 = vadd.f32 %v1074, %v1075
    %v1113 = vadd.f32 %v1076, %v1077
    %v1114 = vadd.f32 %v1078, %v1079
    %v1115 = vadd.f32 %v1080, %v1081
    %v1116 = vadd.f32 %v1082, %v1083
    %v1117 = vadd.f32 %v1084, %v1085
    %v1118 = vld [vmem:[#allocation2] sm:$0xff]
    %v1119 = vld [vmem:[#allocation2 + $0x8] sm:$0xff]
    %v1120 = vld [vmem:[#allocation2 + $0x10] sm:$0xff]
    %v1121 = vld [vmem:[#allocation2 + $0x18] sm:$0xff]
    %v1122 = vld [vmem:[#allocation2 + $0x20] sm:$0xff]
    %v1123 = vld [vmem:[#allocation2 + $0x28] sm:$0xff]
    %v1124 = vld [vmem:[#allocation2 + $0x30] sm:$0xff]
    %v1125 = vld [vmem:[#allocation2 + $0x38] sm:$0xff]
    %v1126 = vld [vmem:[#allocation2 + $0x40] sm:$0xff]
    %v1127 = vld [vmem:[#allocation2 + $0x48] sm:$0xff]
    %v1128 = vld [vmem:[#allocation2 + $0x50] sm:$0xff]
    %v1129 = vld [vmem:[#allocation2 + $0x58] sm:$0xff]
    %v1130 = vld [vmem:[#allocation2 + $0x60] sm:$0xff]
    %v1131 = vld [vmem:[#allocation2 + $0x68] sm:$0xff]
    %v1132 = vld [vmem:[#allocation2 + $0x70] sm:$0xff]
    %v1133 = vld [vmem:[#allocation2 + $0x78] sm:$0xff]
    %v1134 = vld [vmem:[#allocation2 + $0x80] sm:$0xff]
    %v1135 = vld [vmem:[#allocation2 + $0x88] sm:$0xff]
    %v1136 = vld [vmem:[#allocation2 + $0x90] sm:$0xff]
    %v1137 = vld [vmem:[#allocation2 + $0x98] sm:$0xff]
    %v1138 = vld [vmem:[#allocation2 + $0xa0] sm:$0xff]
    %v1139 = vld [vmem:[#allocation2 + $0xa8] sm:$0xff]
    %v1140 = vld [vmem:[#allocation2 + $0xb0] sm:$0xff]
    %v1141 = vld [vmem:[#allocation2 + $0xb8] sm:$0xff]
    %v1142 = vld [vmem:[#allocation2 + $0xc0] sm:$0xff]
    %v1143 = vld [vmem:[#allocation2 + $0xc8] sm:$0xff]
    %v1144 = vld [vmem:[#allocation2 + $0xd0] sm:$0xff]
    %v1145 = vld [vmem:[#allocation2 + $0xd8] sm:$0xff]
    %v1146 = vld [vmem:[#allocation2 + $0xe0] sm:$0xff]
    %v1147 = vld [vmem:[#allocation2 + $0xe8] sm:$0xff]
    %v1148 = vld [vmem:[#allocation2 + $0xf0] sm:$0xff]
    %v1149 = vld [vmem:[#allocation2 + $0xf8] sm:$0xff]
    %v1150 = vadd.f32 %v1118, %v1086
    %v1151 = vadd.f32 %v1119, %v1087
    %v1152 = vadd.f32 %v1120, %v1088
    %v1153 = vadd.f32 %v1121, %v1089
    %v1154 = vadd.f32 %v1122, %v1090
    %v1155 = vadd.f32 %v1123, %v1091
    %v1156 = vadd.f32 %v1124, %v1092
    %v1157 = vadd.f32 %v1125, %v1093
    %v1158 = vadd.f32 %v1126, %v1094
    %v1159 = vadd.f32 %v1127, %v1095
    %v1160 = vadd.f32 %v1128, %v1096
    %v1161 = vadd.f32 %v1129, %v1097
    %v1162 = vadd.f32 %v1130, %v1098
    %v1163 = vadd.f32 %v1131, %v1099
    %v1164 = vadd.f32 %v1132, %v1100
    %v1165 = vadd.f32 %v1133, %v1101
    %v1166 = vadd.f32 %v1134, %v1102
    %v1167 = vadd.f32 %v1135, %v1103
    %v1168 = vadd.f32 %v1136, %v1104
    %v1169 = vadd.f32 %v1137, %v1105
    %v1170 = vadd.f32 %v1138, %v1106
    %v1171 = vadd.f32 %v1139, %v1107
    %v1172 = vadd.f32 %v1140, %v1108
    %v1173 = vadd.f32 %v1141, %v1109
    %v1174 = vadd.f32 %v1142, %v1110
    %v1175 = vadd.f32 %v1143, %v1111
    %v1176 = vadd.f32 %v1144, %v1112
    %v1177 = vadd.f32 %v1145, %v1113
    %v1178 = vadd.f32 %v1146, %v1114
    %v1179 = vadd.f32 %v1147, %v1115
    %v1180 = vadd.f32 %v1148, %v1116
    %v1181 = vadd.f32 %v1149, %v1117
    %1182 = vst [vmem:[#allocation2] sm:$0xff] %v1150
    %1183 = vst [vmem:[#allocation2 + $0x8] sm:$0xff] %v1151
    %1184 = vst [vmem:[#allocation2 + $0x10] sm:$0xff] %v1152
    %1185 = vst [vmem:[#allocation2 + $0x18] sm:$0xff] %v1153
    %1186 = vst [vmem:[#allocation2 + $0x20] sm:$0xff] %v1154
    %1187 = vst [vmem:[#allocation2 + $0x28] sm:$0xff] %v1155
    %1188 = vst [vmem:[#allocation2 + $0x30] sm:$0xff] %v1156
    %1189 = vst [vmem:[#allocation2 + $0x38] sm:$0xff] %v1157
    %1190 = vst [vmem:[#allocation2 + $0x40] sm:$0xff] %v1158
    %1191 = vst [vmem:[#allocation2 + $0x48] sm:$0xff] %v1159
    %1192 = vst [vmem:[#allocation2 + $0x50] sm:$0xff] %v1160
    %1193 = vst [vmem:[#allocation2 + $0x58] sm:$0xff] %v1161
    %1194 = vst [vmem:[#allocation2 + $0x60] sm:$0xff] %v1162
    %1195 = vst [vmem:[#allocation2 + $0x68] sm:$0xff] %v1163
    %1196 = vst [vmem:[#allocation2 + $0x70] sm:$0xff] %v1164
    %1197 = vst [vmem:[#allocation2 + $0x78] sm:$0xff] %v1165
    %1198 = vst [vmem:[#allocation2 + $0x80] sm:$0xff] %v1166
    %1199 = vst [vmem:[#allocation2 + $0x88] sm:$0xff] %v1167
    %1200 = vst [vmem:[#allocation2 + $0x90] sm:$0xff] %v1168
    %1201 = vst [vmem:[#allocation2 + $0x98] sm:$0xff] %v1169
    %1202 = vst [vmem:[#allocation2 + $0xa0] sm:$0xff] %v1170
    %1203 = vst [vmem:[#allocation2 + $0xa8] sm:$0xff] %v1171
    %1204 = vst [vmem:[#allocation2 + $0xb0] sm:$0xff] %v1172
    %1205 = vst [vmem:[#allocation2 + $0xb8] sm:$0xff] %v1173
    %1206 = vst [vmem:[#allocation2 + $0xc0] sm:$0xff] %v1174
    %1207 = vst [vmem:[#allocation2 + $0xc8] sm:$0xff] %v1175
    %1208 = vst [vmem:[#allocation2 + $0xd0] sm:$0xff] %v1176
    %1209 = vst [vmem:[#allocation2 + $0xd8] sm:$0xff] %v1177
    %1210 = vst [vmem:[#allocation2 + $0xe0] sm:$0xff] %v1178
    %1211 = vst [vmem:[#allocation2 + $0xe8] sm:$0xff] %v1179
    %1212 = vst [vmem:[#allocation2 + $0xf0] sm:$0xff] %v1180
    %1213 = vst [vmem:[#allocation2 + $0xf8] sm:$0xff] %v1181
    // Predicated region
    $region30: #{tpu_custom_call.1} parent=1 // pred_check
      %p1214 = pneg %p46
    $region31: #{tpu_custom_call.1} parent=1 // pred_check_branch
      %1216 = sbr.rel (%p1214) target = $region33
    $region32: #{tpu_custom_call.1} parent=1 // pred_region
      %v1217 = vld [vmem:[#allocation2] sm:$0xff]
      %v1218 = vld [vmem:[#allocation2 + $0x8] sm:$0xff]
      %v1219 = vld [vmem:[#allocation2 + $0x10] sm:$0xff]
      %v1220 = vld [vmem:[#allocation2 + $0x18] sm:$0xff]
      %v1221 = vld [vmem:[#allocation2 + $0x20] sm:$0xff]
      %v1222 = vld [vmem:[#allocation2 + $0x28] sm:$0xff]
      %v1223 = vld [vmem:[#allocation2 + $0x30] sm:$0xff]
      %v1224 = vld [vmem:[#allocation2 + $0x38] sm:$0xff]
      %v1225 = vld [vmem:[#allocation2 + $0x40] sm:$0xff]
      %v1226 = vld [vmem:[#allocation2 + $0x48] sm:$0xff]
      %v1227 = vld [vmem:[#allocation2 + $0x50] sm:$0xff]
      %v1228 = vld [vmem:[#allocation2 + $0x58] sm:$0xff]
      %v1229 = vld [vmem:[#allocation2 + $0x60] sm:$0xff]
      %v1230 = vld [vmem:[#allocation2 + $0x68] sm:$0xff]
      %v1231 = vld [vmem:[#allocation2 + $0x70] sm:$0xff]
      %v1232 = vld [vmem:[#allocation2 + $0x78] sm:$0xff]
      %v1233 = vld [vmem:[#allocation2 + $0x80] sm:$0xff]
      %v1234 = vld [vmem:[#allocation2 + $0x88] sm:$0xff]
      %v1235 = vld [vmem:[#allocation2 + $0x90] sm:$0xff]
      %v1236 = vld [vmem:[#allocation2 + $0x98] sm:$0xff]
      %v1237 = vld [vmem:[#allocation2 + $0xa0] sm:$0xff]
      %v1238 = vld [vmem:[#allocation2 + $0xa8] sm:$0xff]
      %v1239 = vld [vmem:[#allocation2 + $0xb0] sm:$0xff]
      %v1240 = vld [vmem:[#allocation2 + $0xb8] sm:$0xff]
      %v1241 = vld [vmem:[#allocation2 + $0xc0] sm:$0xff]
      %v1242 = vld [vmem:[#allocation2 + $0xc8] sm:$0xff]
      %v1243 = vld [vmem:[#allocation2 + $0xd0] sm:$0xff]
      %v1244 = vld [vmem:[#allocation2 + $0xd8] sm:$0xff]
      %v1245 = vld [vmem:[#allocation2 + $0xe0] sm:$0xff]
      %v1246 = vld [vmem:[#allocation2 + $0xe8] sm:$0xff]
      %v1247 = vld [vmem:[#allocation2 + $0xf0] sm:$0xff]
      %v1248 = vld [vmem:[#allocation2 + $0xf8] sm:$0xff]
      %1249 = vadd.xlane.f32.xlu0 %v1217
      %v1250 = vpop.xlane.xlu0 %1249
      %1251 = vadd.xlane.f32.xlu0 %v1218
      %v1252 = vpop.xlane.xlu0 %1251
      %1253 = vadd.xlane.f32.xlu0 %v1219
      %v1254 = vpop.xlane.xlu0 %1253
      %1255 = vadd.xlane.f32.xlu0 %v1220
      %v1256 = vpop.xlane.xlu0 %1255
      %1257 = vadd.xlane.f32.xlu0 %v1221
      %v1258 = vpop.xlane.xlu0 %1257
      %1259 = vadd.xlane.f32.xlu0 %v1222
      %v1260 = vpop.xlane.xlu0 %1259
      %1261 = vadd.xlane.f32.xlu0 %v1223
      %v1262 = vpop.xlane.xlu0 %1261
      %1263 = vadd.xlane.f32.xlu0 %v1224
      %v1264 = vpop.xlane.xlu0 %1263
      %1265 = vadd.xlane.f32.xlu0 %v1225
      %v1266 = vpop.xlane.xlu0 %1265
      %1267 = vadd.xlane.f32.xlu0 %v1226
      %v1268 = vpop.xlane.xlu0 %1267
      %1269 = vadd.xlane.f32.xlu0 %v1227
      %v1270 = vpop.xlane.xlu0 %1269
      %1271 = vadd.xlane.f32.xlu0 %v1228
      %v1272 = vpop.xlane.xlu0 %1271
      %1273 = vadd.xlane.f32.xlu0 %v1229
      %v1274 = vpop.xlane.xlu0 %1273
      %1275 = vadd.xlane.f32.xlu0 %v1230
      %v1276 = vpop.xlane.xlu0 %1275
      %1277 = vadd.xlane.f32.xlu0 %v1231
      %v1278 = vpop.xlane.xlu0 %1277
      %1279 = vadd.xlane.f32.xlu0 %v1232
      %v1280 = vpop.xlane.xlu0 %1279
      %1281 = vadd.xlane.f32.xlu0 %v1233
      %v1282 = vpop.xlane.xlu0 %1281
      %1283 = vadd.xlane.f32.xlu0 %v1234
      %v1284 = vpop.xlane.xlu0 %1283
      %1285 = vadd.xlane.f32.xlu0 %v1235
      %v1286 = vpop.xlane.xlu0 %1285
      %1287 = vadd.xlane.f32.xlu0 %v1236
      %v1288 = vpop.xlane.xlu0 %1287
      %1289 = vadd.xlane.f32.xlu0 %v1237
      %v1290 = vpop.xlane.xlu0 %1289
      %1291 = vadd.xlane.f32.xlu0 %v1238
      %v1292 = vpop.xlane.xlu0 %1291
      %1293 = vadd.xlane.f32.xlu0 %v1239
      %v1294 = vpop.xlane.xlu0 %1293
      %1295 = vadd.xlane.f32.xlu0 %v1240
      %v1296 = vpop.xlane.xlu0 %1295
      %1297 = vadd.xlane.f32.xlu0 %v1241
      %v1298 = vpop.xlane.xlu0 %1297
      %1299 = vadd.xlane.f32.xlu0 %v1242
      %v1300 = vpop.xlane.xlu0 %1299
      %1301 = vadd.xlane.f32.xlu0 %v1243
      %v1302 = vpop.xlane.xlu0 %1301
      %1303 = vadd.xlane.f32.xlu0 %v1244
      %v1304 = vpop.xlane.xlu0 %1303
      %1305 = vadd.xlane.f32.xlu0 %v1245
      %v1306 = vpop.xlane.xlu0 %1305
      %1307 = vadd.xlane.f32.xlu0 %v1246
      %v1308 = vpop.xlane.xlu0 %1307
      %1309 = vadd.xlane.f32.xlu0 %v1247
      %v1310 = vpop.xlane.xlu0 %1309
      %1311 = vadd.xlane.f32.xlu0 %v1248
      %v1312 = vpop.xlane.xlu0 %1311
      %v1313 = vmul.f32 %v1250, 0.00390625
      %v1314 = vmul.f32 %v1252, 0.00390625
      %v1315 = vmul.f32 %v1254, 0.00390625
      %v1316 = vmul.f32 %v1256, 0.00390625
      %v1317 = vmul.f32 %v1258, 0.00390625
      %v1318 = vmul.f32 %v1260, 0.00390625
      %v1319 = vmul.f32 %v1262, 0.00390625
      %v1320 = vmul.f32 %v1264, 0.00390625
      %v1321 = vmul.f32 %v1266, 0.00390625
      %v1322 = vmul.f32 %v1268, 0.00390625
      %v1323 = vmul.f32 %v1270, 0.00390625
      %v1324 = vmul.f32 %v1272, 0.00390625
      %v1325 = vmul.f32 %v1274, 0.00390625
      %v1326 = vmul.f32 %v1276, 0.00390625
      %v1327 = vmul.f32 %v1278, 0.00390625
      %v1328 = vmul.f32 %v1280, 0.00390625
      %v1329 = vmul.f32 %v1282, 0.00390625
      %v1330 = vmul.f32 %v1284, 0.00390625
      %v1331 = vmul.f32 %v1286, 0.00390625
      %v1332 = vmul.f32 %v1288, 0.00390625
      %v1333 = vmul.f32 %v1290, 0.00390625
      %v1334 = vmul.f32 %v1292, 0.00390625
      %v1335 = vmul.f32 %v1294, 0.00390625
      %v1336 = vmul.f32 %v1296, 0.00390625
      %v1337 = vmul.f32 %v1298, 0.00390625
      %v1338 = vmul.f32 %v1300, 0.00390625
      %v1339 = vmul.f32 %v1302, 0.00390625
      %v1340 = vmul.f32 %v1304, 0.00390625
      %v1341 = vmul.f32 %v1306, 0.00390625
      %v1342 = vmul.f32 %v1308, 0.00390625
      %v1343 = vmul.f32 %v1310, 0.00390625
      %v1344 = vmul.f32 %v1312, 0.00390625
      %v1345 = vlog2.pop %v1313
      %v1346 = vmul.f32 %v1345, 0.6931472
      %v1347 = vlog2.pop %v1314
      %v1348 = vmul.f32 %v1347, 0.6931472
      %v1349 = vlog2.pop %v1315
      %v1350 = vmul.f32 %v1349, 0.6931472
      %v1351 = vlog2.pop %v1316
      %v1352 = vmul.f32 %v1351, 0.6931472
      %v1353 = vlog2.pop %v1317
      %v1354 = vmul.f32 %v1353, 0.6931472
      %v1355 = vlog2.pop %v1318
      %v1356 = vmul.f32 %v1355, 0.6931472
      %v1357 = vlog2.pop %v1319
      %v1358 = vmul.f32 %v1357, 0.6931472
      %v1359 = vlog2.pop %v1320
      %v1360 = vmul.f32 %v1359, 0.6931472
      %v1361 = vlog2.pop %v1321
      %v1362 = vmul.f32 %v1361, 0.6931472
      %v1363 = vlog2.pop %v1322
      %v1364 = vmul.f32 %v1363, 0.6931472
      %v1365 = vlog2.pop %v1323
      %v1366 = vmul.f32 %v1365, 0.6931472
      %v1367 = vlog2.pop %v1324
      %v1368 = vmul.f32 %v1367, 0.6931472
      %v1369 = vlog2.pop %v1325
      %v1370 = vmul.f32 %v1369, 0.6931472
      %v1371 = vlog2.pop %v1326
      %v1372 = vmul.f32 %v1371, 0.6931472
      %v1373 = vlog2.pop %v1327
      %v1374 = vmul.f32 %v1373, 0.6931472
      %v1375 = vlog2.pop %v1328
      %v1376 = vmul.f32 %v1375, 0.6931472
      %v1377 = vlog2.pop %v1329
      %v1378 = vmul.f32 %v1377, 0.6931472
      %v1379 = vlog2.pop %v1330
      %v1380 = vmul.f32 %v1379, 0.6931472
      %v1381 = vlog2.pop %v1331
      %v1382 = vmul.f32 %v1381, 0.6931472
      %v1383 = vlog2.pop %v1332
      %v1384 = vmul.f32 %v1383, 0.6931472
      %v1385 = vlog2.pop %v1333
      %v1386 = vmul.f32 %v1385, 0.6931472
      %v1387 = vlog2.pop %v1334
      %v1388 = vmul.f32 %v1387, 0.6931472
      %v1389 = vlog2.pop %v1335
      %v1390 = vmul.f32 %v1389, 0.6931472
      %v1391 = vlog2.pop %v1336
      %v1392 = vmul.f32 %v1391, 0.6931472
      %v1393 = vlog2.pop %v1337
      %v1394 = vmul.f32 %v1393, 0.6931472
      %v1395 = vlog2.pop %v1338
      %v1396 = vmul.f32 %v1395, 0.6931472
      %v1397 = vlog2.pop %v1339
      %v1398 = vmul.f32 %v1397, 0.6931472
      %v1399 = vlog2.pop %v1340
      %v1400 = vmul.f32 %v1399, 0.6931472
      %v1401 = vlog2.pop %v1341
      %v1402 = vmul.f32 %v1401, 0.6931472
      %v1403 = vlog2.pop %v1342
      %v1404 = vmul.f32 %v1403, 0.6931472
      %v1405 = vlog2.pop %v1343
      %v1406 = vmul.f32 %v1405, 0.6931472
      %v1407 = vlog2.pop %v1344
      %v1408 = vmul.f32 %v1407, 0.6931472
      %v1409 = vmul.f32 %v1346, 0.33333334
      %v1410 = vmul.f32 %v1348, 0.33333334
      %v1411 = vmul.f32 %v1350, 0.33333334
      %v1412 = vmul.f32 %v1352, 0.33333334
      %v1413 = vmul.f32 %v1354, 0.33333334
      %v1414 = vmul.f32 %v1356, 0.33333334
      %v1415 = vmul.f32 %v1358, 0.33333334
      %v1416 = vmul.f32 %v1360, 0.33333334
      %v1417 = vmul.f32 %v1362, 0.33333334
      %v1418 = vmul.f32 %v1364, 0.33333334
      %v1419 = vmul.f32 %v1366, 0.33333334
      %v1420 = vmul.f32 %v1368, 0.33333334
      %v1421 = vmul.f32 %v1370, 0.33333334
      %v1422 = vmul.f32 %v1372, 0.33333334
      %v1423 = vmul.f32 %v1374, 0.33333334
      %v1424 = vmul.f32 %v1376, 0.33333334
      %v1425 = vmul.f32 %v1378, 0.33333334
      %v1426 = vmul.f32 %v1380, 0.33333334
      %v1427 = vmul.f32 %v1382, 0.33333334
      %v1428 = vmul.f32 %v1384, 0.33333334
      %v1429 = vmul.f32 %v1386, 0.33333334
      %v1430 = vmul.f32 %v1388, 0.33333334
      %v1431 = vmul.f32 %v1390, 0.33333334
      %v1432 = vmul.f32 %v1392, 0.33333334
      %v1433 = vmul.f32 %v1394, 0.33333334
      %v1434 = vmul.f32 %v1396, 0.33333334
      %v1435 = vmul.f32 %v1398, 0.33333334
      %v1436 = vmul.f32 %v1400, 0.33333334
      %v1437 = vmul.f32 %v1402, 0.33333334
      %v1438 = vmul.f32 %v1404, 0.33333334
      %v1439 = vmul.f32 %v1406, 0.33333334
      %v1440 = vmul.f32 %v1408, 0.33333334
      %v1441 = vmul.f32 %v1409, 1.442695
      %v1442 = vpow.pop %v1441
      %v1443 = vmul.f32 %v1410, 1.442695
      %v1444 = vpow.pop %v1443
      %v1445 = vmul.f32 %v1411, 1.442695
      %v1446 = vpow.pop %v1445
      %v1447 = vmul.f32 %v1412, 1.442695
      %v1448 = vpow.pop %v1447
      %v1449 = vmul.f32 %v1413, 1.442695
      %v1450 = vpow.pop %v1449
      %v1451 = vmul.f32 %v1414, 1.442695
      %v1452 = vpow.pop %v1451
      %v1453 = vmul.f32 %v1415, 1.442695
      %v1454 = vpow.pop %v1453
      %v1455 = vmul.f32 %v1416, 1.442695
      %v1456 = vpow.pop %v1455
      %v1457 = vmul.f32 %v1417, 1.442695
      %v1458 = vpow.pop %v1457
      %v1459 = vmul.f32 %v1418, 1.442695
      %v1460 = vpow.pop %v1459
      %v1461 = vmul.f32 %v1419, 1.442695
      %v1462 = vpow.pop %v1461
      %v1463 = vmul.f32 %v1420, 1.442695
      %v1464 = vpow.pop %v1463
      %v1465 = vmul.f32 %v1421, 1.442695
      %v1466 = vpow.pop %v1465
      %v1467 = vmul.f32 %v1422, 1.442695
      %v1468 = vpow.pop %v1467
      %v1469 = vmul.f32 %v1423, 1.442695
      %v1470 = vpow.pop %v1469
      %v1471 = vmul.f32 %v1424, 1.442695
      %v1472 = vpow.pop %v1471
      %v1473 = vmul.f32 %v1425, 1.442695
      %v1474 = vpow.pop %v1473
      %v1475 = vmul.f32 %v1426, 1.442695
      %v1476 = vpow.pop %v1475
      %v1477 = vmul.f32 %v1427, 1.442695
      %v1478 = vpow.pop %v1477
      %v1479 = vmul.f32 %v1428, 1.442695
      %v1480 = vpow.pop %v1479
      %v1481 = vmul.f32 %v1429, 1.442695
      %v1482 = vpow.pop %v1481
      %v1483 = vmul.f32 %v1430, 1.442695
      %v1484 = vpow.pop %v1483
      %v1485 = vmul.f32 %v1431, 1.442695
      %v1486 = vpow.pop %v1485
      %v1487 = vmul.f32 %v1432, 1.442695
      %v1488 = vpow.pop %v1487
      %v1489 = vmul.f32 %v1433, 1.442695
      %v1490 = vpow.pop %v1489
      %v1491 = vmul.f32 %v1434, 1.442695
      %v1492 = vpow.pop %v1491
      %v1493 = vmul.f32 %v1435, 1.442695
      %v1494 = vpow.pop %v1493
      %v1495 = vmul.f32 %v1436, 1.442695
      %v1496 = vpow.pop %v1495
      %v1497 = vmul.f32 %v1437, 1.442695
      %v1498 = vpow.pop %v1497
      %v1499 = vmul.f32 %v1438, 1.442695
      %v1500 = vpow.pop %v1499
      %v1501 = vmul.f32 %v1439, 1.442695
      %v1502 = vpow.pop %v1501
      %v1503 = vmul.f32 %v1440, 1.442695
      %v1504 = vpow.pop %v1503
      %v1505 = vld [vmem:[#allocation6] sm:$0xff]
      %v1506 = vld [vmem:[#allocation6 + $0x8] sm:$0xff]
      %v1507 = vld [vmem:[#allocation6 + $0x10] sm:$0xff]
      %v1508 = vld [vmem:[#allocation6 + $0x18] sm:$0xff]
      %v1509 = vld [vmem:[#allocation6 + $0x20] sm:$0xff]
      %v1510 = vld [vmem:[#allocation6 + $0x28] sm:$0xff]
      %v1511 = vld [vmem:[#allocation6 + $0x30] sm:$0xff]
      %v1512 = vld [vmem:[#allocation6 + $0x38] sm:$0xff]
      %v1513 = vld [vmem:[#allocation6 + $0x40] sm:$0xff]
      %v1514 = vld [vmem:[#allocation6 + $0x48] sm:$0xff]
      %v1515 = vld [vmem:[#allocation6 + $0x50] sm:$0xff]
      %v1516 = vld [vmem:[#allocation6 + $0x58] sm:$0xff]
      %v1517 = vld [vmem:[#allocation6 + $0x60] sm:$0xff]
      %v1518 = vld [vmem:[#allocation6 + $0x68] sm:$0xff]
      %v1519 = vld [vmem:[#allocation6 + $0x70] sm:$0xff]
      %v1520 = vld [vmem:[#allocation6 + $0x78] sm:$0xff]
      %v1521 = vld [vmem:[%s3] sm:$0x1]
      %v1523 = vlaneseq
      %v1524 = vshrl.u32 %v1523, 7
      %v1525 = vsub.s32 0, %v1524
      %v1526 = vrot.slane %v1521, %v1525
      %v1560 = vlaneseq
      %v1561 = vand.u32 %v1560, 127
      %v1562 = vlaneseq
      %v1563 = vshrl.u32 %v1562, 7
      %v1564 = vsub.s32 %v1561, %v1563
      %v1565 = vrot.slane %v1442, %v1564
      %v1566 = vadd.s32 %v1561, 4294967288
      %v1567 = vlaneseq
      %v1568 = vshrl.u32 %v1567, 7
      %v1569 = vsub.s32 %v1566, %v1568
      %v1570 = vrot.slane %v1444, %v1569
      %vm1571 = vcmask 130112
      %v1572 = vsel %vm1571, %v1570, %v1565
      %v1573 = vadd.s32 %v1561, 4294967280
      %v1574 = vlaneseq
      %v1575 = vshrl.u32 %v1574, 7
      %v1576 = vsub.s32 %v1573, %v1575
      %v1577 = vrot.slane %v1446, %v1576
      %vm1578 = vcmask 195712
      %v1579 = vsel %vm1578, %v1577, %v1572
      %v1580 = vadd.s32 %v1561, 4294967272
      %v1581 = vlaneseq
      %v1582 = vshrl.u32 %v1581, 7
      %v1583 = vsub.s32 %v1580, %v1582
      %v1584 = vrot.slane %v1448, %v1583
      %vm1585 = vcmask 261312
      %v1586 = vsel %vm1585, %v1584, %v1579
      %v1587 = vadd.s32 %v1561, 4294967264
      %v1588 = vlaneseq
      %v1589 = vshrl.u32 %v1588, 7
      %v1590 = vsub.s32 %v1587, %v1589
      %v1591 = vrot.slane %v1450, %v1590
      %vm1592 = vcmask 326912
      %v1593 = vsel %vm1592, %v1591, %v1586
      %v1594 = vadd.s32 %v1561, 4294967256
      %v1595 = vlaneseq
      %v1596 = vshrl.u32 %v1595, 7
      %v1597 = vsub.s32 %v1594, %v1596
      %v1598 = vrot.slane %v1452, %v1597
      %vm1599 = vcmask 392512
      %v1600 = vsel %vm1599, %v1598, %v1593
      %v1601 = vadd.s32 %v1561, 4294967248
      %v1602 = vlaneseq
      %v1603 = vshrl.u32 %v1602, 7
      %v1604 = vsub.s32 %v1601, %v1603
      %v1605 = vrot.slane %v1454, %v1604
      %vm1606 = vcmask 458112
      %v1607 = vsel %vm1606, %v1605, %v1600
      %v1608 = vadd.s32 %v1561, 4294967240
      %v1609 = vlaneseq
      %v1610 = vshrl.u32 %v1609, 7
      %v1611 = vsub.s32 %v1608, %v1610
      %v1612 = vrot.slane %v1456, %v1611
      %vm1613 = vcmask 523712
      %v1614 = vsel %vm1613, %v1612, %v1607
      %v1615 = vadd.s32 %v1561, 4294967232
      %v1616 = vlaneseq
      %v1617 = vshrl.u32 %v1616, 7
      %v1618 = vsub.s32 %v1615, %v1617
      %v1619 = vrot.slane %v1458, %v1618
      %vm1620 = vcmask 589312
      %v1621 = vsel %vm1620, %v1619, %v1614
      %v1622 = vadd.s32 %v1561, 4294967224
      %v1623 = vlaneseq
      %v1624 = vshrl.u32 %v1623, 7
      %v1625 = vsub.s32 %v1622, %v1624
      %v1626 = vrot.slane %v1460, %v1625
      %vm1627 = vcmask 654912
      %v1628 = vsel %vm1627, %v1626, %v1621
      %v1629 = vadd.s32 %v1561, 4294967216
      %v1630 = vlaneseq
      %v1631 = vshrl.u32 %v1630, 7
      %v1632 = vsub.s32 %v1629, %v1631
      %v1633 = vrot.slane %v1462, %v1632
      %vm1634 = vcmask 720512
      %v1635 = vsel %vm1634, %v1633, %v1628
      %v1636 = vadd.s32 %v1561, 4294967208
      %v1637 = vlaneseq
      %v1638 = vshrl.u32 %v1637, 7
      %v1639 = vsub.s32 %v1636, %v1638
      %v1640 = vrot.slane %v1464, %v1639
      %vm1641 = vcmask 786112
      %v1642 = vsel %vm1641, %v1640, %v1635
      %v1643 = vadd.s32 %v1561, 4294967200
      %v1644 = vlaneseq
      %v1645 = vshrl.u32 %v1644, 7
      %v1646 = vsub.s32 %v1643, %v1645
      %v1647 = vrot.slane %v1466, %v1646
      %vm1648 = vcmask 851712
      %v1649 = vsel %vm1648, %v1647, %v1642
      %v1650 = vadd.s32 %v1561, 4294967192
      %v1651 = vlaneseq
      %v1652 = vshrl.u32 %v1651, 7
      %v1653 = vsub.s32 %v1650, %v1652
      %v1654 = vrot.slane %v1468, %v1653
      %vm1655 = vcmask 917312
      %v1656 = vsel %vm1655, %v1654, %v1649
      %v1657 = vadd.s32 %v1561, 4294967184
      %v1658 = vlaneseq
      %v1659 = vshrl.u32 %v1658, 7
      %v1660 = vsub.s32 %v1657, %v1659
      %v1661 = vrot.slane %v1470, %v1660
      %vm1662 = vcmask 982912
      %v1663 = vsel %vm1662, %v1661, %v1656
      %v1664 = vadd.s32 %v1561, 4294967176
      %v1665 = vlaneseq
      %v1666 = vshrl.u32 %v1665, 7
      %v1667 = vsub.s32 %v1664, %v1666
      %v1668 = vrot.slane %v1472, %v1667
      %vm1669 = vcmask 1048512
      %v1670 = vsel %vm1669, %v1668, %v1663
      %v1671 = vlaneseq
      %v1672 = vshrl.u32 %v1671, 7
      %v1673 = vsub.s32 %v1561, %v1672
      %v1674 = vrot.slane %v1474, %v1673
      %v1675 = vlaneseq
      %v1676 = vshrl.u32 %v1675, 7
      %v1677 = vsub.s32 %v1566, %v1676
      %v1678 = vrot.slane %v1476, %v1677
      %v1679 = vsel %vm1571, %v1678, %v1674
      %v1680 = vlaneseq
      %v1681 = vshrl.u32 %v1680, 7
      %v1682 = vsub.s32 %v1573, %v1681
      %v1683 = vrot.slane %v1478, %v1682
      %v1684 = vsel %vm1578, %v1683, %v1679
      %v1685 = vlaneseq
      %v1686 = vshrl.u32 %v1685, 7
      %v1687 = vsub.s32 %v1580, %v1686
      %v1688 = vrot.slane %v1480, %v1687
      %v1689 = vsel %vm1585, %v1688, %v1684
      %v1690 = vlaneseq
      %v1691 = vshrl.u32 %v1690, 7
      %v1692 = vsub.s32 %v1587, %v1691
      %v1693 = vrot.slane %v1482, %v1692
      %v1694 = vsel %vm1592, %v1693, %v1689
      %v1695 = vlaneseq
      %v1696 = vshrl.u32 %v1695, 7
      %v1697 = vsub.s32 %v1594, %v1696
      %v1698 = vrot.slane %v1484, %v1697
      %v1699 = vsel %vm1599, %v1698, %v1694
      %v1700 = vlaneseq
      %v1701 = vshrl.u32 %v1700, 7
      %v1702 = vsub.s32 %v1601, %v1701
      %v1703 = vrot.slane %v1486, %v1702
      %v1704 = vsel %vm1606, %v1703, %v1699
      %v1705 = vlaneseq
      %v1706 = vshrl.u32 %v1705, 7
      %v1707 = vsub.s32 %v1608, %v1706
      %v1708 = vrot.slane %v1488, %v1707
      %v1709 = vsel %vm1613, %v1708, %v1704
      %v1710 = vlaneseq
      %v1711 = vshrl.u32 %v1710, 7
      %v1712 = vsub.s32 %v1615, %v1711
      %v1713 = vrot.slane %v1490, %v1712
      %v1714 = vsel %vm1620, %v1713, %v1709
      %v1715 = vlaneseq
      %v1716 = vshrl.u32 %v1715, 7
      %v1717 = vsub.s32 %v1622, %v1716
      %v1718 = vrot.slane %v1492, %v1717
      %v1719 = vsel %vm1627, %v1718, %v1714
      %v1720 = vlaneseq
      %v1721 = vshrl.u32 %v1720, 7
      %v1722 = vsub.s32 %v1629, %v1721
      %v1723 = vrot.slane %v1494, %v1722
      %v1724 = vsel %vm1634, %v1723, %v1719
      %v1725 = vlaneseq
      %v1726 = vshrl.u32 %v1725, 7
      %v1727 = vsub.s32 %v1636, %v1726
      %v1728 = vrot.slane %v1496, %v1727
      %v1729 = vsel %vm1641, %v1728, %v1724
      %v1730 = vlaneseq
      %v1731 = vshrl.u32 %v1730, 7
      %v1732 = vsub.s32 %v1643, %v1731
      %v1733 = vrot.slane %v1498, %v1732
      %v1734 = vsel %vm1648, %v1733, %v1729
      %v1735 = vlaneseq
      %v1736 = vshrl.u32 %v1735, 7
      %v1737 = vsub.s32 %v1650, %v1736
      %v1738 = vrot.slane %v1500, %v1737
      %v1739 = vsel %vm1655, %v1738, %v1734
      %v1740 = vlaneseq
      %v1741 = vshrl.u32 %v1740, 7
      %v1742 = vsub.s32 %v1657, %v1741
      %v1743 = vrot.slane %v1502, %v1742
      %v1744 = vsel %vm1662, %v1743, %v1739
      %v1745 = vlaneseq
      %v1746 = vshrl.u32 %v1745, 7
      %v1747 = vsub.s32 %v1664, %v1746
      %v1748 = vrot.slane %v1504, %v1747
      %v1749 = vsel %vm1669, %v1748, %v1744
      %vm1750 = vcmask 1041409
      %v1751 = vsel %vm1750, %v1749, %v1670
      %1753 = vmatprep.subr.mxu0 0.0
      %1754 = vmatpush1.msra.mxu0 %v1505
      %1755 = vmatprep.subr.mxu0 0.0
      %1756 = vmatpush1.msra.mxu0 %v1506
      %1757 = vmatprep.subr.mxu0 0.0
      %1758 = vmatpush1.msra.mxu0 %v1507
      %1759 = vmatprep.subr.mxu0 0.0
      %1760 = vmatpush1.msra.mxu0 %v1508
      %1761 = vmatprep.subr.mxu0 0.0
      %1762 = vmatpush1.msra.mxu0 %v1509
      %1763 = vmatprep.subr.mxu0 0.0
      %1764 = vmatpush1.msra.mxu0 %v1510
      %1765 = vmatprep.subr.mxu0 0.0
      %1766 = vmatpush1.msra.mxu0 %v1511
      %1767 = vmatprep.subr.mxu0 0.0
      %1768 = vmatpush1.msra.mxu0 %v1512
      %1769 = vmatprep.subr.mxu0 0.0
      %1770 = vmatpush1.msra.mxu0 %v1513
      %1771 = vmatprep.subr.mxu0 0.0
      %1772 = vmatpush1.msra.mxu0 %v1514
      %1773 = vmatprep.subr.mxu0 0.0
      %1774 = vmatpush1.msra.mxu0 %v1515
      %1775 = vmatprep.subr.mxu0 0.0
      %1776 = vmatpush1.msra.mxu0 %v1516
      %1777 = vmatprep.subr.mxu0 0.0
      %1778 = vmatpush1.msra.mxu0 %v1517
      %1779 = vmatprep.subr.mxu0 0.0
      %1780 = vmatpush1.msra.mxu0 %v1518
      %1781 = vmatprep.subr.mxu0 0.0
      %1782 = vmatpush1.msra.mxu0 %v1519
      %1783 = vmatprep.subr.mxu0 0.0
      %1784 = vmatpush1.msra.mxu0 %v1520
      %1785 = vmatprep.subr.mxu0 0.0
      %1786 = vmatpush1.msra.mxu0 0.0
      %1787 = vmatprep.subr.mxu0 0.0
      %1788 = vmatpush1.msra.mxu0 0.0
      %1789 = vmatprep.subr.mxu0 0.0
      %1790 = vmatpush1.msra.mxu0 0.0
      %1791 = vmatprep.subr.mxu0 0.0
      %1792 = vmatpush1.msra.mxu0 0.0
      %1793 = vmatprep.subr.mxu0 0.0
      %1794 = vmatpush1.msra.mxu0 0.0
      %1795 = vmatprep.subr.mxu0 0.0
      %1796 = vmatpush1.msra.mxu0 0.0
      %1797 = vmatprep.subr.mxu0 0.0
      %1798 = vmatpush1.msra.mxu0 0.0
      %1799 = vmatprep.subr.mxu0 0.0
      %1800 = vmatpush1.msra.mxu0 0.0
      %1801 = vmatprep.subr.mxu0 0.0
      %1802 = vmatpush1.msra.mxu0 0.0
      %1803 = vmatprep.subr.mxu0 0.0
      %1804 = vmatpush1.msra.mxu0 0.0
      %1805 = vmatprep.subr.mxu0 0.0
      %1806 = vmatpush1.msra.mxu0 0.0
      %1807 = vmatprep.subr.mxu0 0.0
      %1808 = vmatpush1.msra.mxu0 0.0
      %1809 = vmatprep.subr.mxu0 0.0
      %1810 = vmatpush1.msra.mxu0 0.0
      %1811 = vmatprep.subr.mxu0 0.0
      %1812 = vmatpush1.msra.mxu0 0.0
      %1813 = vmatprep.subr.mxu0 0.0
      %1814 = vmatpush1.msra.mxu0 0.0
      %1815 = vmatprep.subr.mxu0 0.0
      %1816 = vmatpush1.msra.mxu0 0.0
      %1817 = vmatprep.mubr.f32.mxu0 0.0
      %1818 = vmatmul.mubr.f32.gmra.mrb[0].mxu0 %v1751
      %v1819 = vpop.f32.mrb[0].mxu0
      %v1820 = vadd.f32 %v1526, %v1819
      %v1821 = vpop.f32.mrb[0].mxu0
      %1822 = vdwg.mxu0
      %v1823 = vmul.f32 %v1820, %v1820
      %vm1824 = vcmask 1041408
      %v1825 = vsel %vm1824, %v1823, 0.0
      %1826 = vadd.xlane.f32.xlu0 %v1825
      %v1827 = vpop.xlane.xlu0 %1826
      %v1828 = vmax.f32 %v1827, 1e-24
      %v1829 = vrsqrt.pop %v1828
      %v1830 = vmul.f32 %v1820, %v1829
      %v1833 = vunpack.c.l.s4 1966171168
      %v1834 = vunpack.c.0.s8 %v1833
      %v1835 = vlaneseq
      %v1836 = vshrl.u32 %v1835, 7
      %v1837 = vsub.s32 %v1834, %v1836
      %v1838 = vrot.slane %v1830, %v1837
      %v1839 = vcombine.high %v1838, %v1838
      %v1841 = vunpack.c.l.s4 1966171168
      %v1842 = vunpack.c.0.s8 %v1841
      %v1843 = vlaneseq
      %v1844 = vshrl.u32 %v1843, 7
      %v1845 = vsub.s32 %v1842, %v1844
      %v1846 = vrot.slane %v1838, %v1845
      %v1848 = vunpack.c.l.s4 1966171168
      %v1849 = vunpack.c.0.s8 %v1848
      %v1850 = vlaneseq
      %v1851 = vshrl.u32 %v1850, 7
      %v1852 = vsub.s32 %v1849, %v1851
      %v1853 = vrot.slane %v1839, %v1852
      %1856 = vst [vmem:[#allocation8] sm:$0x1] %v1846
      %1857 = vst [vmem:[#allocation8 + $0x1] sm:$0x1] %v1853
    $region33: #{tpu_custom_call.1} parent=1 // pred_fallthru
      _
    // Predicated region
    $region34: #{tpu_custom_call.1} parent=1 // pred_check
      _
    $region35: #{tpu_custom_call.1} parent=1 // pred_check_branch
      %1859 = sbr.rel (0) target = $region37
    $region36: #{tpu_custom_call.1} parent=1 // pred_region
      %s1861 = ssub.s32 32, 32
      %1862 = vsyncadd [#allocation5], %s1861
      %s1863 = sshll.u32 [#allocation8], 4
      %s1864 = int_to_ptr.vmem [resolvable:$true] %s1863
      %1869 = dma.vmem_to_hbm [thread:$0]  %s1864, 32, %s4, [#allocation5], 16, 16, 1
    $region37: #{tpu_custom_call.1} parent=1 // pred_fallthru
      _
    // Predicated region
    $region38: #{tpu_custom_call.1} parent=1 // pred_check
      _
    $region39: #{tpu_custom_call.1} parent=1 // pred_check_branch
      %1871 = sbr.rel (0) target = $region41
    $region40: #{tpu_custom_call.1} parent=1 // pred_region
      %1872 = dma.done [#allocation5], 32
    $region41: #{tpu_custom_call.1} parent=1 // pred_fallthru
      _
    %1873 = vsyncpa [#allocation4], 1
    %1874 = vsyncpa [#allocation7], 1
    %1875 = vsyncpa [#allocation5], 1

</llo_original>
